<compile_context>
chip_gen: v6e
topology: v6e:2x2x1
jax: 0.10.0
libtpu: 0.0.40
codegen_flags: <defaults>
</compile_context>

<pallas_src>
import jax
import jax.numpy as jnp
from jax import lax
from jax.experimental import pallas as pl
from jax.experimental.pallas import tpu as pltpu


def _next_pow2(n):
    p = 1
    while p < n:
        p *= 2
    return p


def _shuffle_masks(n_in, ndim, axis):
    """Hoisted per-stage select masks for the perfect-shuffle interleave.

    Masks have extent 2 * next_pow2(n_in) along `axis` and 1 elsewhere, so the
    per-stage full-tile work is only two pltpu.roll (XLU) + two selects (VPU);
    jnp.where broadcasts the small masks.  Returns [(k, take_fwd, take_bwd)].
    """
    n = 2 * _next_pow2(n_in)
    shape = [1] * ndim
    shape[axis] = n
    idx = lax.broadcasted_iota(jnp.int32, tuple(shape), axis)
    masks = []
    s = n
    while s >= 4:
        k = s // 4
        m = idx & (s - 1)                       # position within each s-block
        take_fwd = (m >= k) & (m < 2 * k)       # new[c] = old[c + k]
        take_bwd = (m >= 2 * k) & (m < 3 * k)   # new[c] = old[c - k]
        masks.append((k, take_fwd, take_bwd))
        s //= 2
    return masks


def _interleave(a, b, axis, masks):
    """out[..., 2k, ...] = a[..., k, ...]; out[..., 2k+1, ...] = b[..., k, ...]

    Perfect shuffle: concat [a | b], then log2(n)-1 block-swap stages, each two
    pltpu.roll (XLU) + two selects against the precomputed small masks.
    Non power-of-two extents are zero padded and sliced back.
    """
    axis = axis % a.ndim
    n_in = a.shape[axis]
    n_half = _next_pow2(n_in)
    if n_half != n_in:
        pad_shape = list(a.shape)
        pad_shape[axis] = n_half - n_in
        pad = jnp.zeros(pad_shape, a.dtype)
        a = jnp.concatenate([a, pad], axis=axis)
        b = jnp.concatenate([b, pad], axis=axis)
    z = jnp.concatenate([a, b], axis=axis)      # [ a | b ]
    n = 2 * n_half
    for k, take_fwd, take_bwd in masks:
        fwd = pltpu.roll(z, n - k, axis)        # out[c] = z[c + k]
        bwd = pltpu.roll(z, k, axis)            # out[c] = z[c - k]
        z = jnp.where(take_fwd, fwd, jnp.where(take_bwd, bwd, z))
    if n_half != n_in:
        z = lax.slice_in_dim(z, 0, 2 * n_in, axis=axis)
    return z


def _make_kernel(ht, wt, row_mode):
    """row_mode: 'strided' (stride-2 sublane stores) or 'shuffle' (in-register
    row interleave)."""

    def kernel(x_ref, o_ref):
        # x_ref: (1, 4, Cg, ht, wt)   -- four sub-bands for Cg output channels
        # o_ref: (1, Cg, 2*ht, 2*wt)
        x1 = x_ref[0, 0].astype(jnp.float32)
        x2 = x_ref[0, 1].astype(jnp.float32)
        x3 = x_ref[0, 2].astype(jnp.float32)
        x4 = x_ref[0, 3].astype(jnp.float32)

        # Butterfly: 4 muls + 8 adds instead of 16 ops.
        a = (x1 + x4) * 0.5
        b = (x1 - x4) * 0.5
        c = (x2 + x3) * 0.5
        d = (x2 - x3) * 0.5
        o00 = a - c          # h[0::2, 0::2] = (x1 - x2 - x3 + x4) / 2
        o01 = b + d          # h[0::2, 1::2] = (x1 + x2 - x3 - x4) / 2
        o10 = b - d          # h[1::2, 0::2] = (x1 - x2 + x3 - x4) / 2
        o11 = a + c          # h[1::2, 1::2] = (x1 + x2 + x3 + x4) / 2

        # Lane (column) interleave; the hoisted masks are shared by both calls.
        lane_masks = _shuffle_masks(wt, ndim=3, axis=2)
        even_rows = _interleave(o00, o01, 2, lane_masks)   # (Cg, ht, 2*wt)
        odd_rows = _interleave(o10, o11, 2, lane_masks)    # (Cg, ht, 2*wt)

        if row_mode == "strided":
            # Row interleave done by the store unit: even/odd output rows are
            # written with stride-2 sublane stores (no shuffle stages at all).
            o_ref[0, :, pl.ds(0, ht, stride=2), :] = even_rows.astype(o_ref.dtype)
            o_ref[0, :, pl.ds(1, ht, stride=2), :] = odd_rows.astype(o_ref.dtype)
        else:
            row_masks = _shuffle_masks(ht, ndim=3, axis=1)
            out = _interleave(even_rows, odd_rows, 1, row_masks)
            o_ref[0] = out.astype(o_ref.dtype)

    return kernel


_SUBLANE = {4: 8, 2: 16, 1: 32}
_TARGET_IN_TILE = 1 << 20          # ~1 MiB input tile per grid step


def _pick_tiles(batch, co, h, w, itemsize):
    sub = _SUBLANE.get(itemsize, 8)

    # Row tile: whole plane when small, else the largest divisor of H that is
    # a multiple of the dtype-dependent sublane count, capped at 256 rows.
    ht = h
    if h > 256 and h % sub == 0:
        for t in range(256, 0, -1):
            if h % t == 0 and t % sub == 0:
                ht = t
                break

    # Width tile: keep the full row unless even a single-channel tile blows
    # the target and W splits into lane-dense multiples of 128 (wide images).
    wt = w
    if 4 * ht * w * itemsize > _TARGET_IN_TILE and w % 128 == 0:
        wt = 128
        for t in range(w // 128, 0, -1):
            cand = t * 128
            if w % cand == 0 and 4 * ht * cand * itemsize <= _TARGET_IN_TILE:
                wt = cand
                break

    # Channel group: pack as many output channels per block as fit the target.
    cg = 1
    for d in range(1, co + 1):
        if co % d == 0 and 4 * d * ht * wt * itemsize <= _TARGET_IN_TILE:
            cg = d

    # Ensure >= 2 grid steps so both v7x TensorCores get work and the DMA
    # pipeline has something to overlap with.
    steps = batch * (co // cg) * (h // ht) * (w // wt)
    if steps < 2:
        if cg > 1 and cg % 2 == 0:
            cg //= 2
        elif ht % (2 * sub) == 0:
            ht //= 2
        elif wt % 256 == 0:
            wt //= 2
    return cg, ht, wt


def _iwt_pallas(x, row_mode):
    """x: (B, C, H, W), C divisible by 4 -> (B, C//4, 2H, 2W) float32."""
    B, C, H, W = x.shape
    assert C % 4 == 0, "IWT input channels must be a multiple of 4"
    Co = C // 4
    isz = jnp.dtype(x.dtype).itemsize

    cg, ht, wt = _pick_tiles(B, Co, H, W, isz)
    cb, hb, wb = Co // cg, H // ht, W // wt

    # Strided sublane stores only on sublane-aligned row tiles; tiny / odd row
    # counts use the in-register shuffle (cheap there anyway).
    if ht % 8 != 0:
        row_mode = "shuffle"

    # Free metadata reshape: split the channel dim into (band, out_channel).
    x_r = x.reshape(B, 4, Co, H, W)

    t_in = 4 * cg * ht * wt * isz
    t_out = cg * (2 * ht) * (2 * wt) * 4
    # double-buffered in/out tiles + in-kernel f32 intermediates, with margin;
    # clamped so it is valid on v5e (16 MiB default scoped) and v7x (64 MiB).
    vmem_limit = int(min(max(2 * (t_in + t_out) + 5 * t_out, 32 << 20), 64 << 20))

    flops = 3 * B * C * H * W
    bytes_accessed = B * C * H * W * (isz + 4)

    return pl.pallas_call(
        _make_kernel(ht, wt, row_mode),
        out_shape=jax.ShapeDtypeStruct((B, Co, 2 * H, 2 * W), jnp.float32),
        grid=(B, cb, hb, wb),
        in_specs=[pl.BlockSpec((1, 4, cg, ht, wt),
                               lambda b, c, h, w: (b, 0, c, h, w))],
        out_specs=pl.BlockSpec((1, cg, 2 * ht, 2 * wt),
                               lambda b, c, h, w: (b, c, h, w)),
        compiler_params=pltpu.CompilerParams(
            dimension_semantics=("parallel",) * 4,
            vmem_limit_bytes=vmem_limit),
        cost_estimate=pl.CostEstimate(
            flops=flops, transcendentals=0, bytes_accessed=bytes_accessed),
    )(x_r)


def iwt_reference(x):
    """Pure-JAX reference matching the PyTorch iwt_init semantics."""
    B, C, H, W = x.shape
    Co = C // 4
    x = x.astype(jnp.float32)
    x1 = x[:, 0:Co] / 2
    x2 = x[:, Co:2 * Co] / 2
    x3 = x[:, 2 * Co:3 * Co] / 2
    x4 = x[:, 3 * Co:4 * Co] / 2
    h = jnp.zeros((B, Co, 2 * H, 2 * W), jnp.float32)
    h = h.at[:, :, 0::2, 0::2].set(x1 - x2 - x3 + x4)
    h = h.at[:, :, 1::2, 0::2].set(x1 - x2 + x3 - x4)
    h = h.at[:, :, 0::2, 1::2].set(x1 + x2 - x3 - x4)
    h = h.at[:, :, 1::2, 1::2].set(x1 + x2 + x3 + x4)
    return h


_ROW_MODE = None


def _row_store_mode():
    """Probe (once) whether stride-2 sublane stores compile and are numerically
    correct on this backend; otherwise fall back to the in-register shuffle."""
    global _ROW_MODE
    if _ROW_MODE is None:
        try:
            # ensure_compile_time_eval lets the probe run eagerly even if iwt()
            # itself is currently being traced under jax.jit.
            with jax.ensure_compile_time_eval():
                probe = jax.random.normal(jax.random.PRNGKey(0), (1, 4, 8, 128),
                                          dtype=jnp.float32)
                got = jax.block_until_ready(_iwt_pallas(probe, "strided"))
                want = iwt_reference(probe)
                ok = bool(jnp.max(jnp.abs(got - want)) < 1e-5)
            _ROW_MODE = "strided" if ok else "shuffle"
        except Exception:
            _ROW_MODE = "shuffle"
    return _ROW_MODE


def iwt(x):
    """x: (B, C, H, W), C divisible by 4 -> (B, C//4, 2H, 2W) float32."""
    return _iwt_pallas(x, _row_store_mode())


if __name__ == "__main__":
    key = jax.random.PRNGKey(0)
    B, C, H, W = 2, 8, 16, 16          # C = 4 * Co  ->  Co = 2
    x = jax.random.normal(key, (B, C, H, W), dtype=jnp.float32)

    iwt_fn = jax.jit(iwt)
    out = jax.block_until_ready(iwt_fn(x))

    ref = iwt_reference(x)
    assert out.shape == (B, C // 4, 2 * H, 2 * W)
    assert out.dtype == jnp.float32
    err = float(jnp.max(jnp.abs(out - ref)))
    assert err < 1e-5, f"max abs error {err}"

    print("KERNEL_OK")
</pallas_src>

<mosaic_0001>
module attributes {stable_mosaic.version = 11 : i64} {
  func.func @kernel(%arg0: i32, %arg1: i32, %arg2: i32, %arg3: i32, %arg4: memref<1x4x2x16x16xf32, #tpu.memory_space<vmem>>, %arg5: memref<1x2x32x32xf32, #tpu.memory_space<vmem>>) attributes {dimension_semantics = [#tpu.dimension_semantics<parallel>, #tpu.dimension_semantics<parallel>, #tpu.dimension_semantics<parallel>, #tpu.dimension_semantics<parallel>], iteration_bounds = array<i64: 2, 1, 1, 1>, scalar_prefetch = 0 : i64, scratch_operands = 0 : i64, tpu.core_type = #tpu.core_type<tc>, window_params = [{transform_indices = @transform_0, window_bounds = array<i64: 1, 4, 2, 16, 16>}, {transform_indices = @transform_1, window_bounds = array<i64: 1, 2, 32, 32>}]} {
    %c0 = arith.constant 0 : index
    %c0_0 = arith.constant 0 : index
    %c0_1 = arith.constant 0 : index
    %c0_2 = arith.constant 0 : index
    %c0_3 = arith.constant 0 : index
    %0 = vector.load %arg4[%c0, %c0_0, %c0_1, %c0_2, %c0_3] : memref<1x4x2x16x16xf32, #tpu.memory_space<vmem>>, vector<1x1x2x16x16xf32>
    %1 = vector.shape_cast %0 : vector<1x1x2x16x16xf32> to vector<2x16x16xf32>
    %c0_4 = arith.constant 0 : index
    %c1 = arith.constant 1 : index
    %c0_5 = arith.constant 0 : index
    %c0_6 = arith.constant 0 : index
    %c0_7 = arith.constant 0 : index
    %2 = vector.load %arg4[%c0_4, %c1, %c0_5, %c0_6, %c0_7] : memref<1x4x2x16x16xf32, #tpu.memory_space<vmem>>, vector<1x1x2x16x16xf32>
    %3 = vector.shape_cast %2 : vector<1x1x2x16x16xf32> to vector<2x16x16xf32>
    %c0_8 = arith.constant 0 : index
    %c2 = arith.constant 2 : index
    %c0_9 = arith.constant 0 : index
    %c0_10 = arith.constant 0 : index
    %c0_11 = arith.constant 0 : index
    %4 = vector.load %arg4[%c0_8, %c2, %c0_9, %c0_10, %c0_11] : memref<1x4x2x16x16xf32, #tpu.memory_space<vmem>>, vector<1x1x2x16x16xf32>
    %5 = vector.shape_cast %4 : vector<1x1x2x16x16xf32> to vector<2x16x16xf32>
    %c0_12 = arith.constant 0 : index
    %c3 = arith.constant 3 : index
    %c0_13 = arith.constant 0 : index
    %c0_14 = arith.constant 0 : index
    %c0_15 = arith.constant 0 : index
    %6 = vector.load %arg4[%c0_12, %c3, %c0_13, %c0_14, %c0_15] : memref<1x4x2x16x16xf32, #tpu.memory_space<vmem>>, vector<1x1x2x16x16xf32>
    %7 = vector.shape_cast %6 : vector<1x1x2x16x16xf32> to vector<2x16x16xf32>
    %8 = arith.addf %1, %7 : vector<2x16x16xf32>
    %cst = arith.constant 5.000000e-01 : f32
    %9 = vector.broadcast %cst : f32 to vector<2x16x16xf32>
    %10 = arith.mulf %8, %9 : vector<2x16x16xf32>
    %11 = arith.subf %1, %7 : vector<2x16x16xf32>
    %cst_16 = arith.constant 5.000000e-01 : f32
    %12 = vector.broadcast %cst_16 : f32 to vector<2x16x16xf32>
    %13 = arith.mulf %11, %12 : vector<2x16x16xf32>
    %14 = arith.addf %3, %5 : vector<2x16x16xf32>
    %cst_17 = arith.constant 5.000000e-01 : f32
    %15 = vector.broadcast %cst_17 : f32 to vector<2x16x16xf32>
    %16 = arith.mulf %14, %15 : vector<2x16x16xf32>
    %17 = arith.subf %3, %5 : vector<2x16x16xf32>
    %cst_18 = arith.constant 5.000000e-01 : f32
    %18 = vector.broadcast %cst_18 : f32 to vector<2x16x16xf32>
    %19 = arith.mulf %17, %18 : vector<2x16x16xf32>
    %20 = arith.subf %10, %16 : vector<2x16x16xf32>
    %21 = arith.addf %13, %19 : vector<2x16x16xf32>
    %22 = arith.subf %13, %19 : vector<2x16x16xf32>
    %23 = arith.addf %10, %16 : vector<2x16x16xf32>
    %24 = tpu.iota {dimensions = array<i32: 2>} : vector<1x1x32xi32>
    %c31_i32 = arith.constant 31 : i32
    %25 = vector.broadcast %c31_i32 : i32 to vector<1x1x32xi32>
    %26 = arith.andi %24, %25 : vector<1x1x32xi32>
    %c8_i32 = arith.constant 8 : i32
    %27 = vector.broadcast %c8_i32 : i32 to vector<1x1x32xi32>
    %28 = arith.cmpi sge, %26, %27 : vector<1x1x32xi32>
    %c16_i32 = arith.constant 16 : i32
    %29 = vector.broadcast %c16_i32 : i32 to vector<1x1x32xi32>
    %30 = arith.cmpi slt, %26, %29 : vector<1x1x32xi32>
    %31 = arith.andi %28, %30 : vector<1x1x32xi1>
    %c16_i32_19 = arith.constant 16 : i32
    %32 = vector.broadcast %c16_i32_19 : i32 to vector<1x1x32xi32>
    %33 = arith.cmpi sge, %26, %32 : vector<1x1x32xi32>
    %c24_i32 = arith.constant 24 : i32
    %34 = vector.broadcast %c24_i32 : i32 to vector<1x1x32xi32>
    %35 = arith.cmpi slt, %26, %34 : vector<1x1x32xi32>
    %36 = arith.andi %33, %35 : vector<1x1x32xi1>
    %c15_i32 = arith.constant 15 : i32
    %37 = vector.broadcast %c15_i32 : i32 to vector<1x1x32xi32>
    %38 = arith.andi %24, %37 : vector<1x1x32xi32>
    %c4_i32 = arith.constant 4 : i32
    %39 = vector.broadcast %c4_i32 : i32 to vector<1x1x32xi32>
    %40 = arith.cmpi sge, %38, %39 : vector<1x1x32xi32>
    %c8_i32_20 = arith.constant 8 : i32
    %41 = vector.broadcast %c8_i32_20 : i32 to vector<1x1x32xi32>
    %42 = arith.cmpi slt, %38, %41 : vector<1x1x32xi32>
    %43 = arith.andi %40, %42 : vector<1x1x32xi1>
    %c8_i32_21 = arith.constant 8 : i32
    %44 = vector.broadcast %c8_i32_21 : i32 to vector<1x1x32xi32>
    %45 = arith.cmpi sge, %38, %44 : vector<1x1x32xi32>
    %c12_i32 = arith.constant 12 : i32
    %46 = vector.broadcast %c12_i32 : i32 to vector<1x1x32xi32>
    %47 = arith.cmpi slt, %38, %46 : vector<1x1x32xi32>
    %48 = arith.andi %45, %47 : vector<1x1x32xi1>
    %c7_i32 = arith.constant 7 : i32
    %49 = vector.broadcast %c7_i32 : i32 to vector<1x1x32xi32>
    %50 = arith.andi %24, %49 : vector<1x1x32xi32>
    %c2_i32 = arith.constant 2 : i32
    %51 = vector.broadcast %c2_i32 : i32 to vector<1x1x32xi32>
    %52 = arith.cmpi sge, %50, %51 : vector<1x1x32xi32>
    %c4_i32_22 = arith.constant 4 : i32
    %53 = vector.broadcast %c4_i32_22 : i32 to vector<1x1x32xi32>
    %54 = arith.cmpi slt, %50, %53 : vector<1x1x32xi32>
    %55 = arith.andi %52, %54 : vector<1x1x32xi1>
    %c4_i32_23 = arith.constant 4 : i32
    %56 = vector.broadcast %c4_i32_23 : i32 to vector<1x1x32xi32>
    %57 = arith.cmpi sge, %50, %56 : vector<1x1x32xi32>
    %c6_i32 = arith.constant 6 : i32
    %58 = vector.broadcast %c6_i32 : i32 to vector<1x1x32xi32>
    %59 = arith.cmpi slt, %50, %58 : vector<1x1x32xi32>
    %60 = arith.andi %57, %59 : vector<1x1x32xi1>
    %c3_i32 = arith.constant 3 : i32
    %61 = vector.broadcast %c3_i32 : i32 to vector<1x1x32xi32>
    %62 = arith.andi %24, %61 : vector<1x1x32xi32>
    %c1_i32 = arith.constant 1 : i32
    %63 = vector.broadcast %c1_i32 : i32 to vector<1x1x32xi32>
    %64 = arith.cmpi sge, %62, %63 : vector<1x1x32xi32>
    %c2_i32_24 = arith.constant 2 : i32
    %65 = vector.broadcast %c2_i32_24 : i32 to vector<1x1x32xi32>
    %66 = arith.cmpi slt, %62, %65 : vector<1x1x32xi32>
    %67 = arith.andi %64, %66 : vector<1x1x32xi1>
    %c2_i32_25 = arith.constant 2 : i32
    %68 = vector.broadcast %c2_i32_25 : i32 to vector<1x1x32xi32>
    %69 = arith.cmpi sge, %62, %68 : vector<1x1x32xi32>
    %c3_i32_26 = arith.constant 3 : i32
    %70 = vector.broadcast %c3_i32_26 : i32 to vector<1x1x32xi32>
    %71 = arith.cmpi slt, %62, %70 : vector<1x1x32xi32>
    %72 = arith.andi %69, %71 : vector<1x1x32xi1>
    %73 = tpu.concatenate %20, %21 in 2 : vector<2x16x16xf32>, vector<2x16x16xf32> -> vector<2x16x32xf32>
    %c24_i32_27 = arith.constant 24 : i32
    %74 = tpu.dynamic_rotate %73 by %c24_i32_27 dim 2 : vector<2x16x32xf32>, i32 -> vector<2x16x32xf32>
    %c8_i32_28 = arith.constant 8 : i32
    %75 = tpu.dynamic_rotate %73 by %c8_i32_28 dim 2 : vector<2x16x32xf32>, i32 -> vector<2x16x32xf32>
    %76 = vector.shape_cast %36 : vector<1x1x32xi1> to vector<1x1x32xi1>
    %77 = vector.broadcast %76 : vector<1x1x32xi1> to vector<2x16x32xi1>
    %78 = arith.select %77, %75, %73 : vector<2x16x32xi1>, vector<2x16x32xf32>
    %79 = vector.shape_cast %31 : vector<1x1x32xi1> to vector<1x1x32xi1>
    %80 = vector.broadcast %79 : vector<1x1x32xi1> to vector<2x16x32xi1>
    %81 = arith.select %80, %74, %78 : vector<2x16x32xi1>, vector<2x16x32xf32>
    %c28_i32 = arith.constant 28 : i32
    %82 = tpu.dynamic_rotate %81 by %c28_i32 dim 2 : vector<2x16x32xf32>, i32 -> vector<2x16x32xf32>
    %c4_i32_29 = arith.constant 4 : i32
    %83 = tpu.dynamic_rotate %81 by %c4_i32_29 dim 2 : vector<2x16x32xf32>, i32 -> vector<2x16x32xf32>
    %84 = vector.shape_cast %48 : vector<1x1x32xi1> to vector<1x1x32xi1>
    %85 = vector.broadcast %84 : vector<1x1x32xi1> to vector<2x16x32xi1>
    %86 = arith.select %85, %83, %81 : vector<2x16x32xi1>, vector<2x16x32xf32>
    %87 = vector.shape_cast %43 : vector<1x1x32xi1> to vector<1x1x32xi1>
    %88 = vector.broadcast %87 : vector<1x1x32xi1> to vector<2x16x32xi1>
    %89 = arith.select %88, %82, %86 : vector<2x16x32xi1>, vector<2x16x32xf32>
    %c30_i32 = arith.constant 30 : i32
    %90 = tpu.dynamic_rotate %89 by %c30_i32 dim 2 : vector<2x16x32xf32>, i32 -> vector<2x16x32xf32>
    %c2_i32_30 = arith.constant 2 : i32
    %91 = tpu.dynamic_rotate %89 by %c2_i32_30 dim 2 : vector<2x16x32xf32>, i32 -> vector<2x16x32xf32>
    %92 = vector.shape_cast %60 : vector<1x1x32xi1> to vector<1x1x32xi1>
    %93 = vector.broadcast %92 : vector<1x1x32xi1> to vector<2x16x32xi1>
    %94 = arith.select %93, %91, %89 : vector<2x16x32xi1>, vector<2x16x32xf32>
    %95 = vector.shape_cast %55 : vector<1x1x32xi1> to vector<1x1x32xi1>
    %96 = vector.broadcast %95 : vector<1x1x32xi1> to vector<2x16x32xi1>
    %97 = arith.select %96, %90, %94 : vector<2x16x32xi1>, vector<2x16x32xf32>
    %c31_i32_31 = arith.constant 31 : i32
    %98 = tpu.dynamic_rotate %97 by %c31_i32_31 dim 2 : vector<2x16x32xf32>, i32 -> vector<2x16x32xf32>
    %c1_i32_32 = arith.constant 1 : i32
    %99 = tpu.dynamic_rotate %97 by %c1_i32_32 dim 2 : vector<2x16x32xf32>, i32 -> vector<2x16x32xf32>
    %100 = vector.shape_cast %72 : vector<1x1x32xi1> to vector<1x1x32xi1>
    %101 = vector.broadcast %100 : vector<1x1x32xi1> to vector<2x16x32xi1>
    %102 = arith.select %101, %99, %97 : vector<2x16x32xi1>, vector<2x16x32xf32>
    %103 = vector.shape_cast %67 : vector<1x1x32xi1> to vector<1x1x32xi1>
    %104 = vector.broadcast %103 : vector<1x1x32xi1> to vector<2x16x32xi1>
    %105 = arith.select %104, %98, %102 : vector<2x16x32xi1>, vector<2x16x32xf32>
    %106 = tpu.concatenate %22, %23 in 2 : vector<2x16x16xf32>, vector<2x16x16xf32> -> vector<2x16x32xf32>
    %c24_i32_33 = arith.constant 24 : i32
    %107 = tpu.dynamic_rotate %106 by %c24_i32_33 dim 2 : vector<2x16x32xf32>, i32 -> vector<2x16x32xf32>
    %c8_i32_34 = arith.constant 8 : i32
    %108 = tpu.dynamic_rotate %106 by %c8_i32_34 dim 2 : vector<2x16x32xf32>, i32 -> vector<2x16x32xf32>
    %109 = vector.shape_cast %36 : vector<1x1x32xi1> to vector<1x1x32xi1>
    %110 = vector.broadcast %109 : vector<1x1x32xi1> to vector<2x16x32xi1>
    %111 = arith.select %110, %108, %106 : vector<2x16x32xi1>, vector<2x16x32xf32>
    %112 = vector.shape_cast %31 : vector<1x1x32xi1> to vector<1x1x32xi1>
    %113 = vector.broadcast %112 : vector<1x1x32xi1> to vector<2x16x32xi1>
    %114 = arith.select %113, %107, %111 : vector<2x16x32xi1>, vector<2x16x32xf32>
    %c28_i32_35 = arith.constant 28 : i32
    %115 = tpu.dynamic_rotate %114 by %c28_i32_35 dim 2 : vector<2x16x32xf32>, i32 -> vector<2x16x32xf32>
    %c4_i32_36 = arith.constant 4 : i32
    %116 = tpu.dynamic_rotate %114 by %c4_i32_36 dim 2 : vector<2x16x32xf32>, i32 -> vector<2x16x32xf32>
    %117 = vector.shape_cast %48 : vector<1x1x32xi1> to vector<1x1x32xi1>
    %118 = vector.broadcast %117 : vector<1x1x32xi1> to vector<2x16x32xi1>
    %119 = arith.select %118, %116, %114 : vector<2x16x32xi1>, vector<2x16x32xf32>
    %120 = vector.shape_cast %43 : vector<1x1x32xi1> to vector<1x1x32xi1>
    %121 = vector.broadcast %120 : vector<1x1x32xi1> to vector<2x16x32xi1>
    %122 = arith.select %121, %115, %119 : vector<2x16x32xi1>, vector<2x16x32xf32>
    %c30_i32_37 = arith.constant 30 : i32
    %123 = tpu.dynamic_rotate %122 by %c30_i32_37 dim 2 : vector<2x16x32xf32>, i32 -> vector<2x16x32xf32>
    %c2_i32_38 = arith.constant 2 : i32
    %124 = tpu.dynamic_rotate %122 by %c2_i32_38 dim 2 : vector<2x16x32xf32>, i32 -> vector<2x16x32xf32>
    %125 = vector.shape_cast %60 : vector<1x1x32xi1> to vector<1x1x32xi1>
    %126 = vector.broadcast %125 : vector<1x1x32xi1> to vector<2x16x32xi1>
    %127 = arith.select %126, %124, %122 : vector<2x16x32xi1>, vector<2x16x32xf32>
    %128 = vector.shape_cast %55 : vector<1x1x32xi1> to vector<1x1x32xi1>
    %129 = vector.broadcast %128 : vector<1x1x32xi1> to vector<2x16x32xi1>
    %130 = arith.select %129, %123, %127 : vector<2x16x32xi1>, vector<2x16x32xf32>
    %c31_i32_39 = arith.constant 31 : i32
    %131 = tpu.dynamic_rotate %130 by %c31_i32_39 dim 2 : vector<2x16x32xf32>, i32 -> vector<2x16x32xf32>
    %c1_i32_40 = arith.constant 1 : i32
    %132 = tpu.dynamic_rotate %130 by %c1_i32_40 dim 2 : vector<2x16x32xf32>, i32 -> vector<2x16x32xf32>
    %133 = vector.shape_cast %72 : vector<1x1x32xi1> to vector<1x1x32xi1>
    %134 = vector.broadcast %133 : vector<1x1x32xi1> to vector<2x16x32xi1>
    %135 = arith.select %134, %132, %130 : vector<2x16x32xi1>, vector<2x16x32xf32>
    %136 = vector.shape_cast %67 : vector<1x1x32xi1> to vector<1x1x32xi1>
    %137 = vector.broadcast %136 : vector<1x1x32xi1> to vector<2x16x32xi1>
    %138 = arith.select %137, %131, %135 : vector<2x16x32xi1>, vector<2x16x32xf32>
    %139 = tpu.iota {dimensions = array<i32: 1>} : vector<1x32x1xi32>
    %c31_i32_41 = arith.constant 31 : i32
    %140 = vector.broadcast %c31_i32_41 : i32 to vector<1x32x1xi32>
    %141 = arith.andi %139, %140 : vector<1x32x1xi32>
    %c8_i32_42 = arith.constant 8 : i32
    %142 = vector.broadcast %c8_i32_42 : i32 to vector<1x32x1xi32>
    %143 = arith.cmpi sge, %141, %142 : vector<1x32x1xi32>
    %c16_i32_43 = arith.constant 16 : i32
    %144 = vector.broadcast %c16_i32_43 : i32 to vector<1x32x1xi32>
    %145 = arith.cmpi slt, %141, %144 : vector<1x32x1xi32>
    %146 = arith.andi %143, %145 : vector<1x32x1xi1>
    %c16_i32_44 = arith.constant 16 : i32
    %147 = vector.broadcast %c16_i32_44 : i32 to vector<1x32x1xi32>
    %148 = arith.cmpi sge, %141, %147 : vector<1x32x1xi32>
    %c24_i32_45 = arith.constant 24 : i32
    %149 = vector.broadcast %c24_i32_45 : i32 to vector<1x32x1xi32>
    %150 = arith.cmpi slt, %141, %149 : vector<1x32x1xi32>
    %151 = arith.andi %148, %150 : vector<1x32x1xi1>
    %c15_i32_46 = arith.constant 15 : i32
    %152 = vector.broadcast %c15_i32_46 : i32 to vector<1x32x1xi32>
    %153 = arith.andi %139, %152 : vector<1x32x1xi32>
    %c4_i32_47 = arith.constant 4 : i32
    %154 = vector.broadcast %c4_i32_47 : i32 to vector<1x32x1xi32>
    %155 = arith.cmpi sge, %153, %154 : vector<1x32x1xi32>
    %c8_i32_48 = arith.constant 8 : i32
    %156 = vector.broadcast %c8_i32_48 : i32 to vector<1x32x1xi32>
    %157 = arith.cmpi slt, %153, %156 : vector<1x32x1xi32>
    %158 = arith.andi %155, %157 : vector<1x32x1xi1>
    %c8_i32_49 = arith.constant 8 : i32
    %159 = vector.broadcast %c8_i32_49 : i32 to vector<1x32x1xi32>
    %160 = arith.cmpi sge, %153, %159 : vector<1x32x1xi32>
    %c12_i32_50 = arith.constant 12 : i32
    %161 = vector.broadcast %c12_i32_50 : i32 to vector<1x32x1xi32>
    %162 = arith.cmpi slt, %153, %161 : vector<1x32x1xi32>
    %163 = arith.andi %160, %162 : vector<1x32x1xi1>
    %c7_i32_51 = arith.constant 7 : i32
    %164 = vector.broadcast %c7_i32_51 : i32 to vector<1x32x1xi32>
    %165 = arith.andi %139, %164 : vector<1x32x1xi32>
    %c2_i32_52 = arith.constant 2 : i32
    %166 = vector.broadcast %c2_i32_52 : i32 to vector<1x32x1xi32>
    %167 = arith.cmpi sge, %165, %166 : vector<1x32x1xi32>
    %c4_i32_53 = arith.constant 4 : i32
    %168 = vector.broadcast %c4_i32_53 : i32 to vector<1x32x1xi32>
    %169 = arith.cmpi slt, %165, %168 : vector<1x32x1xi32>
    %170 = arith.andi %167, %169 : vector<1x32x1xi1>
    %c4_i32_54 = arith.constant 4 : i32
    %171 = vector.broadcast %c4_i32_54 : i32 to vector<1x32x1xi32>
    %172 = arith.cmpi sge, %165, %171 : vector<1x32x1xi32>
    %c6_i32_55 = arith.constant 6 : i32
    %173 = vector.broadcast %c6_i32_55 : i32 to vector<1x32x1xi32>
    %174 = arith.cmpi slt, %165, %173 : vector<1x32x1xi32>
    %175 = arith.andi %172, %174 : vector<1x32x1xi1>
    %c3_i32_56 = arith.constant 3 : i32
    %176 = vector.broadcast %c3_i32_56 : i32 to vector<1x32x1xi32>
    %177 = arith.andi %139, %176 : vector<1x32x1xi32>
    %c1_i32_57 = arith.constant 1 : i32
    %178 = vector.broadcast %c1_i32_57 : i32 to vector<1x32x1xi32>
    %179 = arith.cmpi sge, %177, %178 : vector<1x32x1xi32>
    %c2_i32_58 = arith.constant 2 : i32
    %180 = vector.broadcast %c2_i32_58 : i32 to vector<1x32x1xi32>
    %181 = arith.cmpi slt, %177, %180 : vector<1x32x1xi32>
    %182 = arith.andi %179, %181 : vector<1x32x1xi1>
    %c2_i32_59 = arith.constant 2 : i32
    %183 = vector.broadcast %c2_i32_59 : i32 to vector<1x32x1xi32>
    %184 = arith.cmpi sge, %177, %183 : vector<1x32x1xi32>
    %c3_i32_60 = arith.constant 3 : i32
    %185 = vector.broadcast %c3_i32_60 : i32 to vector<1x32x1xi32>
    %186 = arith.cmpi slt, %177, %185 : vector<1x32x1xi32>
    %187 = arith.andi %184, %186 : vector<1x32x1xi1>
    %188 = tpu.concatenate %105, %138 in 1 : vector<2x16x32xf32>, vector<2x16x32xf32> -> vector<2x32x32xf32>
    %c24_i32_61 = arith.constant 24 : i32
    %189 = tpu.dynamic_rotate %188 by %c24_i32_61 dim 1 : vector<2x32x32xf32>, i32 -> vector<2x32x32xf32>
    %c8_i32_62 = arith.constant 8 : i32
    %190 = tpu.dynamic_rotate %188 by %c8_i32_62 dim 1 : vector<2x32x32xf32>, i32 -> vector<2x32x32xf32>
    %191 = vector.shape_cast %151 : vector<1x32x1xi1> to vector<1x32x1xi1>
    %192 = vector.broadcast %191 : vector<1x32x1xi1> to vector<2x32x32xi1>
    %193 = arith.select %192, %190, %188 : vector<2x32x32xi1>, vector<2x32x32xf32>
    %194 = vector.shape_cast %146 : vector<1x32x1xi1> to vector<1x32x1xi1>
    %195 = vector.broadcast %194 : vector<1x32x1xi1> to vector<2x32x32xi1>
    %196 = arith.select %195, %189, %193 : vector<2x32x32xi1>, vector<2x32x32xf32>
    %c28_i32_63 = arith.constant 28 : i32
    %197 = tpu.dynamic_rotate %196 by %c28_i32_63 dim 1 : vector<2x32x32xf32>, i32 -> vector<2x32x32xf32>
    %c4_i32_64 = arith.constant 4 : i32
    %198 = tpu.dynamic_rotate %196 by %c4_i32_64 dim 1 : vector<2x32x32xf32>, i32 -> vector<2x32x32xf32>
    %199 = vector.shape_cast %163 : vector<1x32x1xi1> to vector<1x32x1xi1>
    %200 = vector.broadcast %199 : vector<1x32x1xi1> to vector<2x32x32xi1>
    %201 = arith.select %200, %198, %196 : vector<2x32x32xi1>, vector<2x32x32xf32>
    %202 = vector.shape_cast %158 : vector<1x32x1xi1> to vector<1x32x1xi1>
    %203 = vector.broadcast %202 : vector<1x32x1xi1> to vector<2x32x32xi1>
    %204 = arith.select %203, %197, %201 : vector<2x32x32xi1>, vector<2x32x32xf32>
    %c30_i32_65 = arith.constant 30 : i32
    %205 = tpu.dynamic_rotate %204 by %c30_i32_65 dim 1 : vector<2x32x32xf32>, i32 -> vector<2x32x32xf32>
    %c2_i32_66 = arith.constant 2 : i32
    %206 = tpu.dynamic_rotate %204 by %c2_i32_66 dim 1 : vector<2x32x32xf32>, i32 -> vector<2x32x32xf32>
    %207 = vector.shape_cast %175 : vector<1x32x1xi1> to vector<1x32x1xi1>
    %208 = vector.broadcast %207 : vector<1x32x1xi1> to vector<2x32x32xi1>
    %209 = arith.select %208, %206, %204 : vector<2x32x32xi1>, vector<2x32x32xf32>
    %210 = vector.shape_cast %170 : vector<1x32x1xi1> to vector<1x32x1xi1>
    %211 = vector.broadcast %210 : vector<1x32x1xi1> to vector<2x32x32xi1>
    %212 = arith.select %211, %205, %209 : vector<2x32x32xi1>, vector<2x32x32xf32>
    %c31_i32_67 = arith.constant 31 : i32
    %213 = tpu.dynamic_rotate %212 by %c31_i32_67 dim 1 : vector<2x32x32xf32>, i32 -> vector<2x32x32xf32>
    %c1_i32_68 = arith.constant 1 : i32
    %214 = tpu.dynamic_rotate %212 by %c1_i32_68 dim 1 : vector<2x32x32xf32>, i32 -> vector<2x32x32xf32>
    %215 = vector.shape_cast %187 : vector<1x32x1xi1> to vector<1x32x1xi1>
    %216 = vector.broadcast %215 : vector<1x32x1xi1> to vector<2x32x32xi1>
    %217 = arith.select %216, %214, %212 : vector<2x32x32xi1>, vector<2x32x32xf32>
    %218 = vector.shape_cast %182 : vector<1x32x1xi1> to vector<1x32x1xi1>
    %219 = vector.broadcast %218 : vector<1x32x1xi1> to vector<2x32x32xi1>
    %220 = arith.select %219, %213, %217 : vector<2x32x32xi1>, vector<2x32x32xf32>
    %c0_69 = arith.constant 0 : index
    %c0_70 = arith.constant 0 : index
    %c0_71 = arith.constant 0 : index
    %c0_72 = arith.constant 0 : index
    %221 = vector.load %arg5[%c0_69, %c0_70, %c0_71, %c0_72] : memref<1x2x32x32xf32, #tpu.memory_space<vmem>>, vector<1x2x32x32xf32>
    %222 = vector.shape_cast %221 : vector<1x2x32x32xf32> to vector<2x32x32xf32>
    %223 = vector.shape_cast %220 : vector<2x32x32xf32> to vector<1x2x32x32xf32>
    tpu.vector_store %arg5[%c0_69, %c0_70, %c0_71, %c0_72], %223 {strides = array<i32>} : memref<1x2x32x32xf32, #tpu.memory_space<vmem>>, vector<1x2x32x32xf32>,
    return
  }
  func.func @transform_0(%arg0: i32, %arg1: i32, %arg2: i32, %arg3: i32) -> (i32, i32, i32, i32, i32) {
    %c0_i32 = arith.constant 0 : i32
    %c0_i32_0 = arith.constant 0 : i32
    return %arg0, %c0_i32, %arg1, %arg2, %arg3 : i32, i32, i32, i32, i32
  }
  func.func @transform_1(%arg0: i32, %arg1: i32, %arg2: i32, %arg3: i32) -> (i32, i32, i32, i32) {
    %c0_i32 = arith.constant 0 : i32
    return %arg0, %arg1, %arg2, %arg3 : i32, i32, i32, i32
  }
}

</mosaic_0001>

<llo_original>
// kernel: iwt.1
$region0: #{iwt.1}
  #allocation0 [shape = 'u32[]', space=smem, size = 0x4, offset = 0x4, fixed_abs, tag = 'smem constant byte address 0x4 - core index']
  #allocation1 [shape = 'u32[144,128]{1,0:T(1,128)}', space=vmem, size = 0x12000, scoped, tag = 'internal scratch']
  %s0 = inlined_call_operand.hbm [shape: f32[2,4,2,16,16], index: 0, kind: input, shape index: {}]
  %s1 = inlined_call_operand.hbm [shape: f32[2,2,32,32], index: 1, kind: output, shape index: {}]
  %s2 = sld [smem:[#allocation0]]
  $region41: #{iwt.1} parent=0
    _
  %s4 = ssub.s32 1, %s2
  %s5 = scalar_select 0, %s4, %s2
  $region1: #{iwt.1} parent=0
    #allocation2 [shape = 'u8[131072]{0}', space=vmem, size = 0x20000, scoped, tag = 'input window, operand 0']
    #allocation3 [shape = 's32[2]{0}', space=sflag, size = 0x8, scoped, tag = 'scoped memory for iwt.1']
    #allocation4 [shape = 's32[2]{0}', space=sflag, size = 0x8, scoped, tag = 'scoped memory for iwt.1']
    #allocation5 [shape = 'u8[65536]{0}', space=vmem, size = 0x10000, scoped, tag = 'output window, operand 0']
    %6 = vsyncpa [#allocation3], 0
    %s7 = scalar_lea.sflag [#allocation3], 1
    %8 = vsyncpa %s7, 0
    %9 = vsyncpa [#allocation4], 0
    %s10 = scalar_lea.sflag [#allocation4], 1
    %11 = vsyncpa %s10, 0
    loop: start=0, step=1, limit=4
    $region2: #{iwt.1} parent=1 // loop_pre_header
      _
    $region3: #{iwt.1} parent=1 // loop_header
      %s13 = sphi 0, %s17
      %p14 = scmp.ge.s32.totalorder %s13, 4
      %s20 = sphi 0, %s46
      %s21 = sphi 0, %s42
      %s22 = sphi 0, %s38
      %s23 = sphi 0, %s34
      %s24 = sphi 0, %s20
      %s25 = sphi 0, %s21
      %s26 = sphi 0, %s22
      %s27 = sphi 0, %s23
      %s28 = sphi 0, %s24
      %s29 = sphi 0, %s25
      %s30 = sphi 0, %s26
      %s31 = sphi 0, %s27
      %s55 = sphi 0, %s57
      %s58 = sphi 0, %s55
      %s59 = sphi 0, %s58
      %s75 = sphi 0, %s59
      %s87 = sphi 0, %s89
      %s90 = sphi 0, %s87
      %s91 = sphi 0, %s90
      %s107 = sphi 0, %s91
    $region4: #{iwt.1} parent=1 // loop_header_branch
      %16 = sbr.rel (%p14) target = $region8
    $region5: #{iwt.1} parent=1 // loop_body
      %s18 = ssub.s32 %s13, 1
      %s19 = ssub.s32 %s13, 2
      %s32 = sadd.s32 1, %s23
      %p33 = scmp.ge.s32.totalorder %s32, 1
      %s34 = scalar_select %p33, 0, %s32
      %s35 = sadd.s32 1, %s22
      %s36 = scalar_select %p33, %s35, %s22
      %p37 = scmp.ge.s32.totalorder %s36, 1
      %s38 = scalar_select %p37, 0, %s36
      %s39 = sadd.s32 1, %s21
      %s40 = scalar_select %p37, %s39, %s21
      %p41 = scmp.ge.s32.totalorder %s40, 1
      %s42 = scalar_select %p41, 0, %s40
      %s43 = sadd.s32 1, %s20
      %s44 = scalar_select %p41, %s43, %s20
      %p45 = scmp.ge.s32.totalorder %s44, 2
      %s46 = scalar_select %p45, 0, %s44
      %s47 = ssub.s32 %s20, %s46
      %s48 = ssub.s32 %s21, %s42
      %s49 = sor.u32 %s47, %s48
      %s50 = ssub.s32 %s22, %s38
      %s51 = sor.u32 %s49, %s50
      %s52 = ssub.s32 %s23, %s34
      %s53 = sor.u32 %s51, %s52
      %p54 = scmp.eq.s32.totalorder %s53, 0
      %s56 = sadd.s32 %s55, 1
      %s57 = scalar_select %p54, %s55, %s56
      %p60 = pneg %p54
      %p61 = scmp.eq.s32.totalorder %s13, 1
      %p62 = por %p60, %p61
      %p63 = scmp.ne.s32.totalorder %s55, %s58
      %p64 = scmp.eq.s32.totalorder %s13, 0
      %p65 = por %p63, %p64
      %p66 = scmp.ne.s32.totalorder %s55, %s58
      %p67 = scmp.eq.s32.totalorder %s18, 1
      %p68 = por %p66, %p67
      %p69 = scmp.ne.s32.totalorder %s58, %s59
      %p70 = scmp.eq.s32.totalorder %s18, 0
      %p71 = por %p69, %p70
      %p72 = scmp.ne.s32.totalorder %s58, %s59
      %p73 = scmp.eq.s32.totalorder %s19, 1
      %p74 = por %p72, %p73
      %p76 = scmp.ne.s32.totalorder %s59, %s75
      %p77 = scmp.eq.s32.totalorder %s19, 0
      %p78 = por %p76, %p77
      %s79 = ssub.s32 %s20, %s46
      %s80 = ssub.s32 %s21, %s42
      %s81 = sor.u32 %s79, %s80
      %s82 = ssub.s32 %s22, %s38
      %s83 = sor.u32 %s81, %s82
      %s84 = ssub.s32 %s23, %s34
      %s85 = sor.u32 %s83, %s84
      %p86 = scmp.eq.s32.totalorder %s85, 0
      %s88 = sadd.s32 %s87, 1
      %s89 = scalar_select %p86, %s87, %s88
      %p92 = pneg %p86
      %p93 = scmp.eq.s32.totalorder %s13, 1
      %p94 = por %p92, %p93
      %p95 = scmp.ne.s32.totalorder %s87, %s90
      %p96 = scmp.eq.s32.totalorder %s13, 0
      %p97 = por %p95, %p96
      %p98 = scmp.ne.s32.totalorder %s87, %s90
      %p99 = scmp.eq.s32.totalorder %s18, 1
      %p100 = por %p98, %p99
      %p101 = scmp.ne.s32.totalorder %s90, %s91
      %p102 = scmp.eq.s32.totalorder %s18, 0
      %p103 = por %p101, %p102
      %p104 = scmp.ne.s32.totalorder %s90, %s91
      %p105 = scmp.eq.s32.totalorder %s19, 1
      %p106 = por %p104, %p105
      %p108 = scmp.ne.s32.totalorder %s91, %s107
      %p109 = scmp.eq.s32.totalorder %s19, 0
      %p110 = por %p108, %p109
      %p111 = scmp.le.s32.totalorder 1, %s13
      %p112 = scmp.lt.s32.totalorder %s13, 3
      %p113 = pnand %p111, %p112
      %p114 = pneg %p113
      // Predicated region
      $region9: #{iwt.1} parent=5 // pred_check
        _
      $region10: #{iwt.1} parent=5 // pred_check_branch
        %116 = sbr.rel (%p113) target = $region12
      $region11: #{iwt.1} parent=5 // pred_region
        %s117 = ssub.s32 %s13, 1
      $region12: #{iwt.1} parent=5 // pred_fallthru
        _
      %p118 = scmp.lt.s32.totalorder %s13, 2
      // Predicated region
      $region13: #{iwt.1} parent=5 // pred_check
        %p119 = pneg %p118
      $region14: #{iwt.1} parent=5 // pred_check_branch
        %121 = sbr.rel (%p119) target = $region16
      $region15: #{iwt.1} parent=5 // pred_region
        // Predicated region
        $region17: #{iwt.1} parent=15 // pred_check
          %p122 = pneg %p65
        $region18: #{iwt.1} parent=15 // pred_check_branch
          %124 = sbr.rel (%p122) target = $region20
        $region19: #{iwt.1} parent=15 // pred_region
          %s125 = sand.u32 %s55, 1
          %s126 = scalar_lea.sflag [#allocation3], %s125
          %s127 = sand.u32 %s55, 1
          %s128 = smul.addr %s127, 128
          %s129 = scalar_lea.vmem [#allocation2], %s128
          %s130 = smul.u32 2, %s21
          %s131 = smul.u32 2, %s22
          %s133 = ssub.s32 2048, 2048
          %134 = vsyncadd %s126, %s133
          %s135 = sadd.s32 %s23, %s131
          %s136 = smul.addr %s130, 2
          %s137 = sadd.s32 %s135, %s136
          %s138 = smul.addr %s20, 16
          %s139 = sadd.s32 %s137, %s138
          %s140 = smul.addr %s139, 128
          %s141 = scalar_lea.hbm %s0, %s140
          %s142 = sshll.u32 %s129, 4
          %s143 = int_to_ptr.vmem [resolvable:$true] %s142
          %148 = dma.hbm_to_vmem [thread:$0]  %s141, 2048, %s143, %s126, 128, 128, 8
        $region20: #{iwt.1} parent=15 // pred_fallthru
          _
      $region16: #{iwt.1} parent=5 // pred_fallthru
        _
      %p149 = scmp.le.s32.totalorder 1, %s13
      %p150 = scmp.lt.s32.totalorder %s13, 3
      %p151 = pnand %p149, %p150
      %p152 = pneg %p151
      // Predicated region
      $region21: #{iwt.1} parent=5 // pred_check
        _
      $region22: #{iwt.1} parent=5 // pred_check_branch
        %154 = sbr.rel (%p151) target = $region24
      $region23: #{iwt.1} parent=5 // pred_region
        %s155 = ssub.s32 %s13, 1
        %s156 = sand.u32 %s58, 1
        %s157 = scalar_lea.sflag [#allocation3], %s156
        %s158 = sand.u32 %s58, 1
        %s159 = smul.addr %s158, 128
        %s160 = scalar_lea.vmem [#allocation2], %s159
        // Predicated region
        $region25: #{iwt.1} parent=23 // pred_check
          %p161 = pneg %p71
        $region26: #{iwt.1} parent=23 // pred_check_branch
          %163 = sbr.rel (%p161) target = $region28
        $region27: #{iwt.1} parent=23 // pred_region
          %164 = dma.done %s157, 2048
        $region28: #{iwt.1} parent=23 // pred_fallthru
          _
        %s165 = sand.u32 %s58, 1
        %s166 = scalar_lea.sflag [#allocation3], %s165
        %s167 = sand.u32 %s58, 1
        %s168 = smul.addr %s167, 128
        %s169 = scalar_lea.vmem [#allocation2], %s168
        %p170 = pneg %p71
        %p171 = pneg %p68
        %p172 = pneg %p103
        %p173 = pneg %p100
        %s174 = sand.u32 %s90, 1
        %s175 = scalar_lea.sflag [#allocation4], %s174
        %s176 = sand.u32 %s90, 1
        %s177 = smul.addr %s176, 64
        %s178 = scalar_lea.vmem [#allocation5], %s177
        %s179 = smul.u32 2, %s25
        %s180 = smul.u32 2, %s26
        %s181 = smul.u32 2, %s25
        %s182 = smul.u32 4, %s26
        %v183 = vld [vmem:[%s160] sm:$0xff]
        %v184 = vld [vmem:[%s160 + $0x8] sm:$0xff]
        %v185 = vld [vmem:[%s160 + $0x10] sm:$0xff]
        %v186 = vld [vmem:[%s160 + $0x18] sm:$0xff]
        %s187 = scalar_lea.vmem %s160, 32 [#allocation2]
        %v188 = vld [vmem:[%s187] sm:$0xff]
        %v189 = vld [vmem:[%s187 + $0x8] sm:$0xff]
        %v190 = vld [vmem:[%s187 + $0x10] sm:$0xff]
        %v191 = vld [vmem:[%s187 + $0x18] sm:$0xff]
        %s192 = scalar_lea.vmem %s160, 64 [#allocation2]
        %v193 = vld [vmem:[%s192] sm:$0xff]
        %v194 = vld [vmem:[%s192 + $0x8] sm:$0xff]
        %v195 = vld [vmem:[%s192 + $0x10] sm:$0xff]
        %v196 = vld [vmem:[%s192 + $0x18] sm:$0xff]
        %s197 = scalar_lea.vmem %s160, 96 [#allocation2]
        %v198 = vld [vmem:[%s197] sm:$0xff]
        %v199 = vld [vmem:[%s197 + $0x8] sm:$0xff]
        %v200 = vld [vmem:[%s197 + $0x10] sm:$0xff]
        %v201 = vld [vmem:[%s197 + $0x18] sm:$0xff]
        %v202 = vadd.f32 %v183, %v198
        %v203 = vadd.f32 %v184, %v199
        %v204 = vadd.f32 %v185, %v200
        %v205 = vadd.f32 %v186, %v201
        %v206 = vmul.f32 %v202, 0.5
        %v207 = vmul.f32 %v203, 0.5
        %v208 = vmul.f32 %v204, 0.5
        %v209 = vmul.f32 %v205, 0.5
        %v210 = vsub.f32 %v183, %v198
        %v211 = vsub.f32 %v184, %v199
        %v212 = vsub.f32 %v185, %v200
        %v213 = vsub.f32 %v186, %v201
        %v214 = vmul.f32 %v210, 0.5
        %v215 = vmul.f32 %v211, 0.5
        %v216 = vmul.f32 %v212, 0.5
        %v217 = vmul.f32 %v213, 0.5
        %v218 = vadd.f32 %v188, %v193
        %v219 = vadd.f32 %v189, %v194
        %v220 = vadd.f32 %v190, %v195
        %v221 = vadd.f32 %v191, %v196
        %v222 = vmul.f32 %v218, 0.5
        %v223 = vmul.f32 %v219, 0.5
        %v224 = vmul.f32 %v220, 0.5
        %v225 = vmul.f32 %v221, 0.5
        %v226 = vsub.f32 %v188, %v193
        %v227 = vsub.f32 %v189, %v194
        %v228 = vsub.f32 %v190, %v195
        %v229 = vsub.f32 %v191, %v196
        %v230 = vmul.f32 %v226, 0.5
        %v231 = vmul.f32 %v227, 0.5
        %v232 = vmul.f32 %v228, 0.5
        %v233 = vmul.f32 %v229, 0.5
        %v234 = vsub.f32 %v206, %v222
        %v235 = vsub.f32 %v207, %v223
        %v236 = vsub.f32 %v208, %v224
        %v237 = vsub.f32 %v209, %v225
        %v238 = vadd.f32 %v214, %v230
        %v239 = vadd.f32 %v215, %v231
        %v240 = vadd.f32 %v216, %v232
        %v241 = vadd.f32 %v217, %v233
        %v242 = vsub.f32 %v214, %v230
        %v243 = vsub.f32 %v215, %v231
        %v244 = vsub.f32 %v216, %v232
        %v245 = vsub.f32 %v217, %v233
        %v246 = vadd.f32 %v206, %v222
        %v247 = vadd.f32 %v207, %v223
        %v248 = vadd.f32 %v208, %v224
        %v249 = vadd.f32 %v209, %v225
        %v250 = vlaneseq
        %v251 = vand.u32 %v250, 127
        %v252 = vand.u32 %v251, 31
        %vm253 = vcmp.ge.s32.totalorder %v252, 8
        %vm254 = vcmp.lt.s32.totalorder %v252, 16
        %vm255 = vmand %vm253, %vm254
        %vm256 = vcmp.ge.s32.totalorder %v252, 16
        %vm257 = vcmp.lt.s32.totalorder %v252, 24
        %vm258 = vmand %vm256, %vm257
        %v259 = vand.u32 %v251, 15
        %vm260 = vcmp.ge.s32.totalorder %v259, 4
        %vm261 = vcmp.lt.s32.totalorder %v259, 8
        %vm262 = vmand %vm260, %vm261
        %vm263 = vcmp.ge.s32.totalorder %v259, 8
        %vm264 = vcmp.lt.s32.totalorder %v259, 12
        %vm265 = vmand %vm263, %vm264
        %v266 = vand.u32 %v251, 7
        %vm267 = vcmp.ge.s32.totalorder %v266, 2
        %vm268 = vcmp.lt.s32.totalorder %v266, 4
        %vm269 = vmand %vm267, %vm268
        %vm270 = vcmp.ge.s32.totalorder %v266, 4
        %vm271 = vcmp.lt.s32.totalorder %v266, 6
        %vm272 = vmand %vm270, %vm271
        %v273 = vand.u32 %v251, 3
        %vm274 = vcmp.ge.s32.totalorder %v273, 1
        %vm275 = vcmp.lt.s32.totalorder %v273, 2
        %vm276 = vmand %vm274, %vm275
        %vm277 = vcmp.ge.s32.totalorder %v273, 2
        %vm278 = vcmp.lt.s32.totalorder %v273, 3
        %vm279 = vmand %vm277, %vm278
        %284 = vrot.lane.b32.xlu0 %v238, 16
        %v285 = vpop.permute.xlu0 %284
        %286 = vrot.lane.b32.xlu0 %v239, 16
        %v287 = vpop.permute.xlu0 %286
        %288 = vrot.lane.b32.xlu0 %v240, 16
        %v289 = vpop.permute.xlu0 %288
        %290 = vrot.lane.b32.xlu0 %v241, 16
        %v291 = vpop.permute.xlu0 %290
        %vm296 = vcmask 130048
        %v297 = vsel %vm296, %v234, %v285
        %v298 = vsel %vm296, %v235, %v287
        %v299 = vsel %vm296, %v236, %v289
        %v300 = vsel %vm296, %v237, %v291
        %vm301 = vcmask 1047808
        %302 = vrot.lane.b32.xlu0 %v297, 32
        %v303 = vpop.permute.xlu0 %302
        %v304 = vsel %vm301, %v303, %v297
        %305 = vrot.lane.b32.xlu0 %v298, 32
        %v306 = vpop.permute.xlu0 %305
        %v307 = vsel %vm301, %v306, %v298
        %308 = vrot.lane.b32.xlu0 %v299, 32
        %v309 = vpop.permute.xlu0 %308
        %v310 = vsel %vm301, %v309, %v299
        %311 = vrot.lane.b32.xlu0 %v300, 32
        %v312 = vpop.permute.xlu0 %311
        %v313 = vsel %vm301, %v312, %v300
        %314 = vrot.lane.b32.xlu0 %v304, 32
        %v315 = vpop.permute.xlu0 %314
        %316 = vrot.lane.b32.xlu0 %v307, 32
        %v317 = vpop.permute.xlu0 %316
        %318 = vrot.lane.b32.xlu0 %v310, 32
        %v319 = vpop.permute.xlu0 %318
        %320 = vrot.lane.b32.xlu0 %v313, 32
        %v321 = vpop.permute.xlu0 %320
        %v322 = vsel %vm301, %v315, %v297
        %v323 = vsel %vm301, %v317, %v298
        %v324 = vsel %vm301, %v319, %v299
        %v325 = vsel %vm301, %v321, %v300
        %v326 = vsel %vm258, 1, 0
        %vm327 = vcmp.eq.s32.totalorder %v326, 1
        %332 = vrot.lane.b32.xlu0 %v322, 104
        %v333 = vpop.permute.xlu0 %332
        %334 = vrot.lane.b32.xlu0 %v323, 104
        %v335 = vpop.permute.xlu0 %334
        %336 = vrot.lane.b32.xlu0 %v324, 104
        %v337 = vpop.permute.xlu0 %336
        %338 = vrot.lane.b32.xlu0 %v325, 104
        %v339 = vpop.permute.xlu0 %338
        %v344 = vsel %vm327, %v333, %v297
        %v345 = vsel %vm327, %v335, %v298
        %v346 = vsel %vm327, %v337, %v299
        %v347 = vsel %vm327, %v339, %v300
        %v348 = vsel %vm255, 1, 0
        %vm349 = vcmp.eq.s32.totalorder %v348, 1
        %350 = vrot.lane.b32.xlu0 %v322, 120
        %v351 = vpop.permute.xlu0 %350
        %352 = vrot.lane.b32.xlu0 %v323, 120
        %v353 = vpop.permute.xlu0 %352
        %354 = vrot.lane.b32.xlu0 %v324, 120
        %v355 = vpop.permute.xlu0 %354
        %356 = vrot.lane.b32.xlu0 %v325, 120
        %v357 = vpop.permute.xlu0 %356
        %v362 = vsel %vm349, %v351, %v344
        %v363 = vsel %vm349, %v353, %v345
        %v364 = vsel %vm349, %v355, %v346
        %v365 = vsel %vm349, %v357, %v347
        %366 = vrot.lane.b32.xlu0 %v362, 32
        %v367 = vpop.permute.xlu0 %366
        %v368 = vsel %vm301, %v367, %v362
        %369 = vrot.lane.b32.xlu0 %v363, 32
        %v370 = vpop.permute.xlu0 %369
        %v371 = vsel %vm301, %v370, %v363
        %372 = vrot.lane.b32.xlu0 %v364, 32
        %v373 = vpop.permute.xlu0 %372
        %v374 = vsel %vm301, %v373, %v364
        %375 = vrot.lane.b32.xlu0 %v365, 32
        %v376 = vpop.permute.xlu0 %375
        %v377 = vsel %vm301, %v376, %v365
        %378 = vrot.lane.b32.xlu0 %v368, 32
        %v379 = vpop.permute.xlu0 %378
        %380 = vrot.lane.b32.xlu0 %v371, 32
        %v381 = vpop.permute.xlu0 %380
        %382 = vrot.lane.b32.xlu0 %v374, 32
        %v383 = vpop.permute.xlu0 %382
        %384 = vrot.lane.b32.xlu0 %v377, 32
        %v385 = vpop.permute.xlu0 %384
        %v386 = vsel %vm301, %v379, %v362
        %v387 = vsel %vm301, %v381, %v363
        %v388 = vsel %vm301, %v383, %v364
        %v389 = vsel %vm301, %v385, %v365
        %v390 = vsel %vm265, 1, 0
        %vm391 = vcmp.eq.s32.totalorder %v390, 1
        %396 = vrot.lane.b32.xlu0 %v386, 100
        %v397 = vpop.permute.xlu0 %396
        %398 = vrot.lane.b32.xlu0 %v387, 100
        %v399 = vpop.permute.xlu0 %398
        %400 = vrot.lane.b32.xlu0 %v388, 100
        %v401 = vpop.permute.xlu0 %400
        %402 = vrot.lane.b32.xlu0 %v389, 100
        %v403 = vpop.permute.xlu0 %402
        %v408 = vsel %vm391, %v397, %v362
        %v409 = vsel %vm391, %v399, %v363
        %v410 = vsel %vm391, %v401, %v364
        %v411 = vsel %vm391, %v403, %v365
        %v412 = vsel %vm262, 1, 0
        %vm413 = vcmp.eq.s32.totalorder %v412, 1
        %414 = vrot.lane.b32.xlu0 %v386, 124
        %v415 = vpop.permute.xlu0 %414
        %416 = vrot.lane.b32.xlu0 %v387, 124
        %v417 = vpop.permute.xlu0 %416
        %418 = vrot.lane.b32.xlu0 %v388, 124
        %v419 = vpop.permute.xlu0 %418
        %420 = vrot.lane.b32.xlu0 %v389, 124
        %v421 = vpop.permute.xlu0 %420
        %v426 = vsel %vm413, %v415, %v408
        %v427 = vsel %vm413, %v417, %v409
        %v428 = vsel %vm413, %v419, %v410
        %v429 = vsel %vm413, %v421, %v411
        %430 = vrot.lane.b32.xlu0 %v426, 32
        %v431 = vpop.permute.xlu0 %430
        %v432 = vsel %vm301, %v431, %v426
        %433 = vrot.lane.b32.xlu0 %v427, 32
        %v434 = vpop.permute.xlu0 %433
        %v435 = vsel %vm301, %v434, %v427
        %436 = vrot.lane.b32.xlu0 %v428, 32
        %v437 = vpop.permute.xlu0 %436
        %v438 = vsel %vm301, %v437, %v428
        %439 = vrot.lane.b32.xlu0 %v429, 32
        %v440 = vpop.permute.xlu0 %439
        %v441 = vsel %vm301, %v440, %v429
        %442 = vrot.lane.b32.xlu0 %v432, 32
        %v443 = vpop.permute.xlu0 %442
        %444 = vrot.lane.b32.xlu0 %v435, 32
        %v445 = vpop.permute.xlu0 %444
        %446 = vrot.lane.b32.xlu0 %v438, 32
        %v447 = vpop.permute.xlu0 %446
        %448 = vrot.lane.b32.xlu0 %v441, 32
        %v449 = vpop.permute.xlu0 %448
        %v450 = vsel %vm301, %v443, %v426
        %v451 = vsel %vm301, %v445, %v427
        %v452 = vsel %vm301, %v447, %v428
        %v453 = vsel %vm301, %v449, %v429
        %v454 = vsel %vm272, 1, 0
        %vm455 = vcmp.eq.s32.totalorder %v454, 1
        %460 = vrot.lane.b32.xlu0 %v450, 98
        %v461 = vpop.permute.xlu0 %460
        %462 = vrot.lane.b32.xlu0 %v451, 98
        %v463 = vpop.permute.xlu0 %462
        %464 = vrot.lane.b32.xlu0 %v452, 98
        %v465 = vpop.permute.xlu0 %464
        %466 = vrot.lane.b32.xlu0 %v453, 98
        %v467 = vpop.permute.xlu0 %466
        %v472 = vsel %vm455, %v461, %v426
        %v473 = vsel %vm455, %v463, %v427
        %v474 = vsel %vm455, %v465, %v428
        %v475 = vsel %vm455, %v467, %v429
        %v476 = vsel %vm269, 1, 0
        %vm477 = vcmp.eq.s32.totalorder %v476, 1
        %478 = vrot.lane.b32.xlu0 %v450, 126
        %v479 = vpop.permute.xlu0 %478
        %480 = vrot.lane.b32.xlu0 %v451, 126
        %v481 = vpop.permute.xlu0 %480
        %482 = vrot.lane.b32.xlu0 %v452, 126
        %v483 = vpop.permute.xlu0 %482
        %484 = vrot.lane.b32.xlu0 %v453, 126
        %v485 = vpop.permute.xlu0 %484
        %v490 = vsel %vm477, %v479, %v472
        %v491 = vsel %vm477, %v481, %v473
        %v492 = vsel %vm477, %v483, %v474
        %v493 = vsel %vm477, %v485, %v475
        %494 = vrot.lane.b32.xlu0 %v490, 32
        %v495 = vpop.permute.xlu0 %494
        %v496 = vsel %vm301, %v495, %v490
        %497 = vrot.lane.b32.xlu0 %v491, 32
        %v498 = vpop.permute.xlu0 %497
        %v499 = vsel %vm301, %v498, %v491
        %500 = vrot.lane.b32.xlu0 %v492, 32
        %v501 = vpop.permute.xlu0 %500
        %v502 = vsel %vm301, %v501, %v492
        %503 = vrot.lane.b32.xlu0 %v493, 32
        %v504 = vpop.permute.xlu0 %503
        %v505 = vsel %vm301, %v504, %v493
        %506 = vrot.lane.b32.xlu0 %v496, 32
        %v507 = vpop.permute.xlu0 %506
        %508 = vrot.lane.b32.xlu0 %v499, 32
        %v509 = vpop.permute.xlu0 %508
        %510 = vrot.lane.b32.xlu0 %v502, 32
        %v511 = vpop.permute.xlu0 %510
        %512 = vrot.lane.b32.xlu0 %v505, 32
        %v513 = vpop.permute.xlu0 %512
        %v514 = vsel %vm301, %v507, %v490
        %v515 = vsel %vm301, %v509, %v491
        %v516 = vsel %vm301, %v511, %v492
        %v517 = vsel %vm301, %v513, %v493
        %v518 = vsel %vm279, 1, 0
        %vm519 = vcmp.eq.s32.totalorder %v518, 1
        %524 = vrot.lane.b32.xlu0 %v514, 97
        %v525 = vpop.permute.xlu0 %524
        %526 = vrot.lane.b32.xlu0 %v515, 97
        %v527 = vpop.permute.xlu0 %526
        %528 = vrot.lane.b32.xlu0 %v516, 97
        %v529 = vpop.permute.xlu0 %528
        %530 = vrot.lane.b32.xlu0 %v517, 97
        %v531 = vpop.permute.xlu0 %530
        %v536 = vsel %vm519, %v525, %v490
        %v537 = vsel %vm519, %v527, %v491
        %v538 = vsel %vm519, %v529, %v492
        %v539 = vsel %vm519, %v531, %v493
        %v540 = vsel %vm276, 1, 0
        %vm541 = vcmp.eq.s32.totalorder %v540, 1
        %542 = vrot.lane.b32.xlu0 %v514, 127
        %v543 = vpop.permute.xlu0 %542
        %544 = vrot.lane.b32.xlu0 %v515, 127
        %v545 = vpop.permute.xlu0 %544
        %546 = vrot.lane.b32.xlu0 %v516, 127
        %v547 = vpop.permute.xlu0 %546
        %548 = vrot.lane.b32.xlu0 %v517, 127
        %v549 = vpop.permute.xlu0 %548
        %v554 = vsel %vm541, %v543, %v536
        %v555 = vsel %vm541, %v545, %v537
        %v556 = vsel %vm541, %v547, %v538
        %v557 = vsel %vm541, %v549, %v539
        %562 = vrot.lane.b32.xlu0 %v246, 16
        %v563 = vpop.permute.xlu0 %562
        %564 = vrot.lane.b32.xlu0 %v247, 16
        %v565 = vpop.permute.xlu0 %564
        %566 = vrot.lane.b32.xlu0 %v248, 16
        %v567 = vpop.permute.xlu0 %566
        %568 = vrot.lane.b32.xlu0 %v249, 16
        %v569 = vpop.permute.xlu0 %568
        %v574 = vsel %vm296, %v242, %v563
        %v575 = vsel %vm296, %v243, %v565
        %v576 = vsel %vm296, %v244, %v567
        %v577 = vsel %vm296, %v245, %v569
        %578 = vrot.lane.b32.xlu0 %v574, 32
        %v579 = vpop.permute.xlu0 %578
        %v580 = vsel %vm301, %v579, %v574
        %581 = vrot.lane.b32.xlu0 %v575, 32
        %v582 = vpop.permute.xlu0 %581
        %v583 = vsel %vm301, %v582, %v575
        %584 = vrot.lane.b32.xlu0 %v576, 32
        %v585 = vpop.permute.xlu0 %584
        %v586 = vsel %vm301, %v585, %v576
        %587 = vrot.lane.b32.xlu0 %v577, 32
        %v588 = vpop.permute.xlu0 %587
        %v589 = vsel %vm301, %v588, %v577
        %590 = vrot.lane.b32.xlu0 %v580, 32
        %v591 = vpop.permute.xlu0 %590
        %592 = vrot.lane.b32.xlu0 %v583, 32
        %v593 = vpop.permute.xlu0 %592
        %594 = vrot.lane.b32.xlu0 %v586, 32
        %v595 = vpop.permute.xlu0 %594
        %596 = vrot.lane.b32.xlu0 %v589, 32
        %v597 = vpop.permute.xlu0 %596
        %v598 = vsel %vm301, %v591, %v574
        %v599 = vsel %vm301, %v593, %v575
        %v600 = vsel %vm301, %v595, %v576
        %v601 = vsel %vm301, %v597, %v577
        %606 = vrot.lane.b32.xlu0 %v598, 104
        %v607 = vpop.permute.xlu0 %606
        %608 = vrot.lane.b32.xlu0 %v599, 104
        %v609 = vpop.permute.xlu0 %608
        %610 = vrot.lane.b32.xlu0 %v600, 104
        %v611 = vpop.permute.xlu0 %610
        %612 = vrot.lane.b32.xlu0 %v601, 104
        %v613 = vpop.permute.xlu0 %612
        %v618 = vsel %vm327, %v607, %v574
        %v619 = vsel %vm327, %v609, %v575
        %v620 = vsel %vm327, %v611, %v576
        %v621 = vsel %vm327, %v613, %v577
        %622 = vrot.lane.b32.xlu0 %v598, 120
        %v623 = vpop.permute.xlu0 %622
        %624 = vrot.lane.b32.xlu0 %v599, 120
        %v625 = vpop.permute.xlu0 %624
        %626 = vrot.lane.b32.xlu0 %v600, 120
        %v627 = vpop.permute.xlu0 %626
        %628 = vrot.lane.b32.xlu0 %v601, 120
        %v629 = vpop.permute.xlu0 %628
        %v634 = vsel %vm349, %v623, %v618
        %v635 = vsel %vm349, %v625, %v619
        %v636 = vsel %vm349, %v627, %v620
        %v637 = vsel %vm349, %v629, %v621
        %638 = vrot.lane.b32.xlu0 %v634, 32
        %v639 = vpop.permute.xlu0 %638
        %v640 = vsel %vm301, %v639, %v634
        %641 = vrot.lane.b32.xlu0 %v635, 32
        %v642 = vpop.permute.xlu0 %641
        %v643 = vsel %vm301, %v642, %v635
        %644 = vrot.lane.b32.xlu0 %v636, 32
        %v645 = vpop.permute.xlu0 %644
        %v646 = vsel %vm301, %v645, %v636
        %647 = vrot.lane.b32.xlu0 %v637, 32
        %v648 = vpop.permute.xlu0 %647
        %v649 = vsel %vm301, %v648, %v637
        %650 = vrot.lane.b32.xlu0 %v640, 32
        %v651 = vpop.permute.xlu0 %650
        %652 = vrot.lane.b32.xlu0 %v643, 32
        %v653 = vpop.permute.xlu0 %652
        %654 = vrot.lane.b32.xlu0 %v646, 32
        %v655 = vpop.permute.xlu0 %654
        %656 = vrot.lane.b32.xlu0 %v649, 32
        %v657 = vpop.permute.xlu0 %656
        %v658 = vsel %vm301, %v651, %v634
        %v659 = vsel %vm301, %v653, %v635
        %v660 = vsel %vm301, %v655, %v636
        %v661 = vsel %vm301, %v657, %v637
        %666 = vrot.lane.b32.xlu0 %v658, 100
        %v667 = vpop.permute.xlu0 %666
        %668 = vrot.lane.b32.xlu0 %v659, 100
        %v669 = vpop.permute.xlu0 %668
        %670 = vrot.lane.b32.xlu0 %v660, 100
        %v671 = vpop.permute.xlu0 %670
        %672 = vrot.lane.b32.xlu0 %v661, 100
        %v673 = vpop.permute.xlu0 %672
        %v678 = vsel %vm391, %v667, %v634
        %v679 = vsel %vm391, %v669, %v635
        %v680 = vsel %vm391, %v671, %v636
        %v681 = vsel %vm391, %v673, %v637
        %682 = vrot.lane.b32.xlu0 %v658, 124
        %v683 = vpop.permute.xlu0 %682
        %684 = vrot.lane.b32.xlu0 %v659, 124
        %v685 = vpop.permute.xlu0 %684
        %686 = vrot.lane.b32.xlu0 %v660, 124
        %v687 = vpop.permute.xlu0 %686
        %688 = vrot.lane.b32.xlu0 %v661, 124
        %v689 = vpop.permute.xlu0 %688
        %v694 = vsel %vm413, %v683, %v678
        %v695 = vsel %vm413, %v685, %v679
        %v696 = vsel %vm413, %v687, %v680
        %v697 = vsel %vm413, %v689, %v681
        %698 = vrot.lane.b32.xlu0 %v694, 32
        %v699 = vpop.permute.xlu0 %698
        %v700 = vsel %vm301, %v699, %v694
        %701 = vrot.lane.b32.xlu0 %v695, 32
        %v702 = vpop.permute.xlu0 %701
        %v703 = vsel %vm301, %v702, %v695
        %704 = vrot.lane.b32.xlu0 %v696, 32
        %v705 = vpop.permute.xlu0 %704
        %v706 = vsel %vm301, %v705, %v696
        %707 = vrot.lane.b32.xlu0 %v697, 32
        %v708 = vpop.permute.xlu0 %707
        %v709 = vsel %vm301, %v708, %v697
        %710 = vrot.lane.b32.xlu0 %v700, 32
        %v711 = vpop.permute.xlu0 %710
        %712 = vrot.lane.b32.xlu0 %v703, 32
        %v713 = vpop.permute.xlu0 %712
        %714 = vrot.lane.b32.xlu0 %v706, 32
        %v715 = vpop.permute.xlu0 %714
        %716 = vrot.lane.b32.xlu0 %v709, 32
        %v717 = vpop.permute.xlu0 %716
        %v718 = vsel %vm301, %v711, %v694
        %v719 = vsel %vm301, %v713, %v695
        %v720 = vsel %vm301, %v715, %v696
        %v721 = vsel %vm301, %v717, %v697
        %726 = vrot.lane.b32.xlu0 %v718, 98
        %v727 = vpop.permute.xlu0 %726
        %728 = vrot.lane.b32.xlu0 %v719, 98
        %v729 = vpop.permute.xlu0 %728
        %730 = vrot.lane.b32.xlu0 %v720, 98
        %v731 = vpop.permute.xlu0 %730
        %732 = vrot.lane.b32.xlu0 %v721, 98
        %v733 = vpop.permute.xlu0 %732
        %v738 = vsel %vm455, %v727, %v694
        %v739 = vsel %vm455, %v729, %v695
        %v740 = vsel %vm455, %v731, %v696
        %v741 = vsel %vm455, %v733, %v697
        %742 = vrot.lane.b32.xlu0 %v718, 126
        %v743 = vpop.permute.xlu0 %742
        %744 = vrot.lane.b32.xlu0 %v719, 126
        %v745 = vpop.permute.xlu0 %744
        %746 = vrot.lane.b32.xlu0 %v720, 126
        %v747 = vpop.permute.xlu0 %746
        %748 = vrot.lane.b32.xlu0 %v721, 126
        %v749 = vpop.permute.xlu0 %748
        %v754 = vsel %vm477, %v743, %v738
        %v755 = vsel %vm477, %v745, %v739
        %v756 = vsel %vm477, %v747, %v740
        %v757 = vsel %vm477, %v749, %v741
        %758 = vrot.lane.b32.xlu0 %v754, 32
        %v759 = vpop.permute.xlu0 %758
        %v760 = vsel %vm301, %v759, %v754
        %761 = vrot.lane.b32.xlu0 %v755, 32
        %v762 = vpop.permute.xlu0 %761
        %v763 = vsel %vm301, %v762, %v755
        %764 = vrot.lane.b32.xlu0 %v756, 32
        %v765 = vpop.permute.xlu0 %764
        %v766 = vsel %vm301, %v765, %v756
        %767 = vrot.lane.b32.xlu0 %v757, 32
        %v768 = vpop.permute.xlu0 %767
        %v769 = vsel %vm301, %v768, %v757
        %770 = vrot.lane.b32.xlu0 %v760, 32
        %v771 = vpop.permute.xlu0 %770
        %772 = vrot.lane.b32.xlu0 %v763, 32
        %v773 = vpop.permute.xlu0 %772
        %774 = vrot.lane.b32.xlu0 %v766, 32
        %v775 = vpop.permute.xlu0 %774
        %776 = vrot.lane.b32.xlu0 %v769, 32
        %v777 = vpop.permute.xlu0 %776
        %v778 = vsel %vm301, %v771, %v754
        %v779 = vsel %vm301, %v773, %v755
        %v780 = vsel %vm301, %v775, %v756
        %v781 = vsel %vm301, %v777, %v757
        %786 = vrot.lane.b32.xlu0 %v778, 97
        %v787 = vpop.permute.xlu0 %786
        %788 = vrot.lane.b32.xlu0 %v779, 97
        %v789 = vpop.permute.xlu0 %788
        %790 = vrot.lane.b32.xlu0 %v780, 97
        %v791 = vpop.permute.xlu0 %790
        %792 = vrot.lane.b32.xlu0 %v781, 97
        %v793 = vpop.permute.xlu0 %792
        %v798 = vsel %vm519, %v787, %v754
        %v799 = vsel %vm519, %v789, %v755
        %v800 = vsel %vm519, %v791, %v756
        %v801 = vsel %vm519, %v793, %v757
        %802 = vrot.lane.b32.xlu0 %v778, 127
        %v803 = vpop.permute.xlu0 %802
        %804 = vrot.lane.b32.xlu0 %v779, 127
        %v805 = vpop.permute.xlu0 %804
        %806 = vrot.lane.b32.xlu0 %v780, 127
        %v807 = vpop.permute.xlu0 %806
        %808 = vrot.lane.b32.xlu0 %v781, 127
        %v809 = vpop.permute.xlu0 %808
        %v814 = vsel %vm541, %v803, %v798
        %v815 = vsel %vm541, %v805, %v799
        %v816 = vsel %vm541, %v807, %v800
        %v817 = vsel %vm541, %v809, %v801
        %v818 = vlaneseq
        %v819 = vshrl.u32 %v818, 7
        %v820 = vadd.s32 %v819, 8
        %v821 = vadd.s32 %v819, 16
        %v822 = vadd.s32 %v819, 24
        %v823 = vand.u32 %v819, 31
        %v824 = vand.u32 %v820, 31
        %v825 = vand.u32 %v821, 31
        %v826 = vand.u32 %v822, 31
        %vm827 = vcmp.ge.s32.totalorder %v823, 8
        %vm828 = vcmp.ge.s32.totalorder %v824, 8
        %vm829 = vcmp.ge.s32.totalorder %v825, 8
        %vm830 = vcmp.ge.s32.totalorder %v826, 8
        %vm831 = vcmp.lt.s32.totalorder %v823, 16
        %vm832 = vcmp.lt.s32.totalorder %v824, 16
        %vm833 = vcmp.lt.s32.totalorder %v825, 16
        %vm834 = vcmp.lt.s32.totalorder %v826, 16
        %vm835 = vmand %vm827, %vm831
        %vm836 = vmand %vm828, %vm832
        %vm837 = vmand %vm829, %vm833
        %vm838 = vmand %vm830, %vm834
        %vm839 = vcmp.ge.s32.totalorder %v823, 16
        %vm840 = vcmp.ge.s32.totalorder %v824, 16
        %vm841 = vcmp.ge.s32.totalorder %v825, 16
        %vm842 = vcmp.ge.s32.totalorder %v826, 16
        %vm843 = vcmp.lt.s32.totalorder %v823, 24
        %vm844 = vcmp.lt.s32.totalorder %v824, 24
        %vm845 = vcmp.lt.s32.totalorder %v825, 24
        %vm846 = vcmp.lt.s32.totalorder %v826, 24
        %vm847 = vmand %vm839, %vm843
        %vm848 = vmand %vm840, %vm844
        %vm849 = vmand %vm841, %vm845
        %vm850 = vmand %vm842, %vm846
        %v851 = vand.u32 %v819, 15
        %v852 = vand.u32 %v820, 15
        %v853 = vand.u32 %v821, 15
        %v854 = vand.u32 %v822, 15
        %vm855 = vcmp.ge.s32.totalorder %v851, 4
        %vm856 = vcmp.ge.s32.totalorder %v852, 4
        %vm857 = vcmp.ge.s32.totalorder %v853, 4
        %vm858 = vcmp.ge.s32.totalorder %v854, 4
        %vm859 = vcmp.lt.s32.totalorder %v851, 8
        %vm860 = vcmp.lt.s32.totalorder %v852, 8
        %vm861 = vcmp.lt.s32.totalorder %v853, 8
        %vm862 = vcmp.lt.s32.totalorder %v854, 8
        %vm863 = vmand %vm855, %vm859
        %vm864 = vmand %vm856, %vm860
        %vm865 = vmand %vm857, %vm861
        %vm866 = vmand %vm858, %vm862
        %vm867 = vcmp.ge.s32.totalorder %v851, 8
        %vm868 = vcmp.ge.s32.totalorder %v852, 8
        %vm869 = vcmp.ge.s32.totalorder %v853, 8
        %vm870 = vcmp.ge.s32.totalorder %v854, 8
        %vm871 = vcmp.lt.s32.totalorder %v851, 12
        %vm872 = vcmp.lt.s32.totalorder %v852, 12
        %vm873 = vcmp.lt.s32.totalorder %v853, 12
        %vm874 = vcmp.lt.s32.totalorder %v854, 12
        %vm875 = vmand %vm867, %vm871
        %vm876 = vmand %vm868, %vm872
        %vm877 = vmand %vm869, %vm873
        %vm878 = vmand %vm870, %vm874
        %v879 = vand.u32 %v819, 7
        %v880 = vand.u32 %v820, 7
        %v881 = vand.u32 %v821, 7
        %v882 = vand.u32 %v822, 7
        %vm883 = vcmp.ge.s32.totalorder %v879, 2
        %vm884 = vcmp.ge.s32.totalorder %v880, 2
        %vm885 = vcmp.ge.s32.totalorder %v881, 2
        %vm886 = vcmp.ge.s32.totalorder %v882, 2
        %vm887 = vcmp.lt.s32.totalorder %v879, 4
        %vm888 = vcmp.lt.s32.totalorder %v880, 4
        %vm889 = vcmp.lt.s32.totalorder %v881, 4
        %vm890 = vcmp.lt.s32.totalorder %v882, 4
        %vm891 = vmand %vm883, %vm887
        %vm892 = vmand %vm884, %vm888
        %vm893 = vmand %vm885, %vm889
        %vm894 = vmand %vm886, %vm890
        %vm895 = vcmp.ge.s32.totalorder %v879, 4
        %vm896 = vcmp.ge.s32.totalorder %v880, 4
        %vm897 = vcmp.ge.s32.totalorder %v881, 4
        %vm898 = vcmp.ge.s32.totalorder %v882, 4
        %vm899 = vcmp.lt.s32.totalorder %v879, 6
        %vm900 = vcmp.lt.s32.totalorder %v880, 6
        %vm901 = vcmp.lt.s32.totalorder %v881, 6
        %vm902 = vcmp.lt.s32.totalorder %v882, 6
        %vm903 = vmand %vm895, %vm899
        %vm904 = vmand %vm896, %vm900
        %vm905 = vmand %vm897, %vm901
        %vm906 = vmand %vm898, %vm902
        %v907 = vand.u32 %v819, 3
        %v908 = vand.u32 %v820, 3
        %v909 = vand.u32 %v821, 3
        %v910 = vand.u32 %v822, 3
        %vm911 = vcmp.ge.s32.totalorder %v907, 1
        %vm912 = vcmp.ge.s32.totalorder %v908, 1
        %vm913 = vcmp.ge.s32.totalorder %v909, 1
        %vm914 = vcmp.ge.s32.totalorder %v910, 1
        %vm915 = vcmp.lt.s32.totalorder %v907, 2
        %vm916 = vcmp.lt.s32.totalorder %v908, 2
        %vm917 = vcmp.lt.s32.totalorder %v909, 2
        %vm918 = vcmp.lt.s32.totalorder %v910, 2
        %vm919 = vmand %vm911, %vm915
        %vm920 = vmand %vm912, %vm916
        %vm921 = vmand %vm913, %vm917
        %vm922 = vmand %vm914, %vm918
        %vm923 = vcmp.ge.s32.totalorder %v907, 2
        %vm924 = vcmp.ge.s32.totalorder %v908, 2
        %vm925 = vcmp.ge.s32.totalorder %v909, 2
        %vm926 = vcmp.ge.s32.totalorder %v910, 2
        %vm927 = vcmp.lt.s32.totalorder %v907, 3
        %vm928 = vcmp.lt.s32.totalorder %v908, 3
        %vm929 = vcmp.lt.s32.totalorder %v909, 3
        %vm930 = vcmp.lt.s32.totalorder %v910, 3
        %vm931 = vmand %vm923, %vm927
        %vm932 = vmand %vm924, %vm928
        %vm933 = vmand %vm925, %vm929
        %vm934 = vmand %vm926, %vm930
        %v935 = vsel %vm847, 1, 0
        %v936 = vsel %vm848, 1, 0
        %v937 = vsel %vm849, 1, 0
        %v938 = vsel %vm850, 1, 0
        %vm939 = vcmp.eq.s32.totalorder %v935, 1
        %vm940 = vcmp.eq.s32.totalorder %v936, 1
        %vm941 = vcmp.eq.s32.totalorder %v937, 1
        %vm942 = vcmp.eq.s32.totalorder %v938, 1
        %v943 = vsel %vm939, %v815, %v554
        %v944 = vsel %vm940, %v554, %v555
        %v945 = vsel %vm941, %v555, %v814
        %v946 = vsel %vm942, %v814, %v815
        %v947 = vsel %vm939, %v817, %v556
        %v948 = vsel %vm940, %v556, %v557
        %v949 = vsel %vm941, %v557, %v816
        %v950 = vsel %vm942, %v816, %v817
        %v951 = vsel %vm835, 1, 0
        %v952 = vsel %vm836, 1, 0
        %v953 = vsel %vm837, 1, 0
        %v954 = vsel %vm838, 1, 0
        %vm955 = vcmp.eq.s32.totalorder %v951, 1
        %vm956 = vcmp.eq.s32.totalorder %v952, 1
        %vm957 = vcmp.eq.s32.totalorder %v953, 1
        %vm958 = vcmp.eq.s32.totalorder %v954, 1
        %v959 = vsel %vm955, %v555, %v943
        %v960 = vsel %vm956, %v814, %v944
        %v961 = vsel %vm957, %v815, %v945
        %v962 = vsel %vm958, %v554, %v946
        %v963 = vsel %vm955, %v557, %v947
        %v964 = vsel %vm956, %v816, %v948
        %v965 = vsel %vm957, %v817, %v949
        %v966 = vsel %vm958, %v556, %v950
        %v967 = vrot.slane %v959, 4
        %v968 = vrot.slane %v963, 4
        %v969 = vrot.slane %v960, 4
        %v970 = vrot.slane %v964, 4
        %v971 = vrot.slane %v961, 4
        %v972 = vrot.slane %v965, 4
        %v973 = vrot.slane %v962, 4
        %v974 = vrot.slane %v966, 4
        %vm975 = vcmp.lt.s32.totalorder %v819, 4
        %v976 = vsel %vm975, %v971, %v973
        %v977 = vsel %vm975, %v972, %v974
        %v978 = vsel %vm975, %v969, %v971
        %v979 = vsel %vm975, %v970, %v972
        %v980 = vsel %vm975, %v967, %v969
        %v981 = vsel %vm975, %v968, %v970
        %v982 = vsel %vm975, %v973, %v967
        %v983 = vsel %vm975, %v974, %v968
        %v984 = vsel %vm875, 1, 0
        %v985 = vsel %vm876, 1, 0
        %v986 = vsel %vm877, 1, 0
        %v987 = vsel %vm878, 1, 0
        %vm988 = vcmp.eq.s32.totalorder %v984, 1
        %vm989 = vcmp.eq.s32.totalorder %v985, 1
        %vm990 = vcmp.eq.s32.totalorder %v986, 1
        %vm991 = vcmp.eq.s32.totalorder %v987, 1
        %v992 = vsel %vm988, %v982, %v959
        %v993 = vsel %vm989, %v980, %v960
        %v994 = vsel %vm990, %v978, %v961
        %v995 = vsel %vm991, %v976, %v962
        %v996 = vsel %vm988, %v983, %v963
        %v997 = vsel %vm989, %v981, %v964
        %v998 = vsel %vm990, %v979, %v965
        %v999 = vsel %vm991, %v977, %v966
        %v1000 = vsel %vm863, 1, 0
        %v1001 = vsel %vm864, 1, 0
        %v1002 = vsel %vm865, 1, 0
        %v1003 = vsel %vm866, 1, 0
        %vm1004 = vcmp.eq.s32.totalorder %v1000, 1
        %vm1005 = vcmp.eq.s32.totalorder %v1001, 1
        %vm1006 = vcmp.eq.s32.totalorder %v1002, 1
        %vm1007 = vcmp.eq.s32.totalorder %v1003, 1
        %v1008 = vsel %vm1004, %v980, %v992
        %v1009 = vsel %vm1005, %v978, %v993
        %v1010 = vsel %vm1006, %v976, %v994
        %v1011 = vsel %vm1007, %v982, %v995
        %v1012 = vsel %vm1004, %v981, %v996
        %v1013 = vsel %vm1005, %v979, %v997
        %v1014 = vsel %vm1006, %v977, %v998
        %v1015 = vsel %vm1007, %v983, %v999
        %v1016 = vrot.slane %v1008, 2
        %v1017 = vrot.slane %v1012, 2
        %v1018 = vrot.slane %v1009, 2
        %v1019 = vrot.slane %v1013, 2
        %v1020 = vrot.slane %v1010, 2
        %v1021 = vrot.slane %v1014, 2
        %v1022 = vrot.slane %v1011, 2
        %v1023 = vrot.slane %v1015, 2
        %vm1024 = vcmp.lt.s32.totalorder %v819, 6
        %v1025 = vsel %vm1024, %v1020, %v1022
        %v1026 = vsel %vm1024, %v1021, %v1023
        %v1027 = vsel %vm1024, %v1018, %v1020
        %v1028 = vsel %vm1024, %v1019, %v1021
        %v1029 = vsel %vm1024, %v1016, %v1018
        %v1030 = vsel %vm1024, %v1017, %v1019
        %v1031 = vsel %vm1024, %v1022, %v1016
        %v1032 = vsel %vm1024, %v1023, %v1017
        %v1033 = vrot.slane %v1008, 6
        %v1034 = vrot.slane %v1012, 6
        %v1035 = vrot.slane %v1009, 6
        %v1036 = vrot.slane %v1013, 6
        %v1037 = vrot.slane %v1010, 6
        %v1038 = vrot.slane %v1014, 6
        %v1039 = vrot.slane %v1011, 6
        %v1040 = vrot.slane %v1015, 6
        %vm1041 = vcmp.lt.s32.totalorder %v819, 2
        %v1042 = vsel %vm1041, %v1037, %v1039
        %v1043 = vsel %vm1041, %v1038, %v1040
        %v1044 = vsel %vm1041, %v1035, %v1037
        %v1045 = vsel %vm1041, %v1036, %v1038
        %v1046 = vsel %vm1041, %v1033, %v1035
        %v1047 = vsel %vm1041, %v1034, %v1036
        %v1048 = vsel %vm1041, %v1039, %v1033
        %v1049 = vsel %vm1041, %v1040, %v1034
        %v1050 = vsel %vm903, 1, 0
        %v1051 = vsel %vm904, 1, 0
        %v1052 = vsel %vm905, 1, 0
        %v1053 = vsel %vm906, 1, 0
        %vm1054 = vcmp.eq.s32.totalorder %v1050, 1
        %vm1055 = vcmp.eq.s32.totalorder %v1051, 1
        %vm1056 = vcmp.eq.s32.totalorder %v1052, 1
        %vm1057 = vcmp.eq.s32.totalorder %v1053, 1
        %v1058 = vsel %vm1054, %v1048, %v1008
        %v1059 = vsel %vm1055, %v1046, %v1009
        %v1060 = vsel %vm1056, %v1044, %v1010
        %v1061 = vsel %vm1057, %v1042, %v1011
        %v1062 = vsel %vm1054, %v1049, %v1012
        %v1063 = vsel %vm1055, %v1047, %v1013
        %v1064 = vsel %vm1056, %v1045, %v1014
        %v1065 = vsel %vm1057, %v1043, %v1015
        %v1066 = vsel %vm891, 1, 0
        %v1067 = vsel %vm892, 1, 0
        %v1068 = vsel %vm893, 1, 0
        %v1069 = vsel %vm894, 1, 0
        %vm1070 = vcmp.eq.s32.totalorder %v1066, 1
        %vm1071 = vcmp.eq.s32.totalorder %v1067, 1
        %vm1072 = vcmp.eq.s32.totalorder %v1068, 1
        %vm1073 = vcmp.eq.s32.totalorder %v1069, 1
        %v1074 = vsel %vm1070, %v1029, %v1058
        %v1075 = vsel %vm1071, %v1027, %v1059
        %v1076 = vsel %vm1072, %v1025, %v1060
        %v1077 = vsel %vm1073, %v1031, %v1061
        %v1078 = vsel %vm1070, %v1030, %v1062
        %v1079 = vsel %vm1071, %v1028, %v1063
        %v1080 = vsel %vm1072, %v1026, %v1064
        %v1081 = vsel %vm1073, %v1032, %v1065
        %v1082 = vrot.slane %v1074, 1
        %v1083 = vrot.slane %v1078, 1
        %v1084 = vrot.slane %v1075, 1
        %v1085 = vrot.slane %v1079, 1
        %v1086 = vrot.slane %v1076, 1
        %v1087 = vrot.slane %v1080, 1
        %v1088 = vrot.slane %v1077, 1
        %v1089 = vrot.slane %v1081, 1
        %vm1090 = vcmp.lt.s32.totalorder %v819, 7
        %v1091 = vsel %vm1090, %v1086, %v1088
        %v1092 = vsel %vm1090, %v1087, %v1089
        %v1093 = vsel %vm1090, %v1084, %v1086
        %v1094 = vsel %vm1090, %v1085, %v1087
        %v1095 = vsel %vm1090, %v1082, %v1084
        %v1096 = vsel %vm1090, %v1083, %v1085
        %v1097 = vsel %vm1090, %v1088, %v1082
        %v1098 = vsel %vm1090, %v1089, %v1083
        %v1099 = vrot.slane %v1074, 7
        %v1100 = vrot.slane %v1078, 7
        %v1101 = vrot.slane %v1075, 7
        %v1102 = vrot.slane %v1079, 7
        %v1103 = vrot.slane %v1076, 7
        %v1104 = vrot.slane %v1080, 7
        %v1105 = vrot.slane %v1077, 7
        %v1106 = vrot.slane %v1081, 7
        %vm1107 = vcmp.lt.s32.totalorder %v819, 1
        %v1108 = vsel %vm1107, %v1103, %v1105
        %v1109 = vsel %vm1107, %v1104, %v1106
        %v1110 = vsel %vm1107, %v1101, %v1103
        %v1111 = vsel %vm1107, %v1102, %v1104
        %v1112 = vsel %vm1107, %v1099, %v1101
        %v1113 = vsel %vm1107, %v1100, %v1102
        %v1114 = vsel %vm1107, %v1105, %v1099
        %v1115 = vsel %vm1107, %v1106, %v1100
        %v1116 = vsel %vm931, 1, 0
        %v1117 = vsel %vm932, 1, 0
        %v1118 = vsel %vm933, 1, 0
        %v1119 = vsel %vm934, 1, 0
        %vm1120 = vcmp.eq.s32.totalorder %v1116, 1
        %vm1121 = vcmp.eq.s32.totalorder %v1117, 1
        %vm1122 = vcmp.eq.s32.totalorder %v1118, 1
        %vm1123 = vcmp.eq.s32.totalorder %v1119, 1
        %v1124 = vsel %vm1120, %v1114, %v1074
        %v1125 = vsel %vm1121, %v1112, %v1075
        %v1126 = vsel %vm1122, %v1110, %v1076
        %v1127 = vsel %vm1123, %v1108, %v1077
        %v1128 = vsel %vm1120, %v1115, %v1078
        %v1129 = vsel %vm1121, %v1113, %v1079
        %v1130 = vsel %vm1122, %v1111, %v1080
        %v1131 = vsel %vm1123, %v1109, %v1081
        %v1132 = vsel %vm919, 1, 0
        %v1133 = vsel %vm920, 1, 0
        %v1134 = vsel %vm921, 1, 0
        %v1135 = vsel %vm922, 1, 0
        %vm1136 = vcmp.eq.s32.totalorder %v1132, 1
        %vm1137 = vcmp.eq.s32.totalorder %v1133, 1
        %vm1138 = vcmp.eq.s32.totalorder %v1134, 1
        %vm1139 = vcmp.eq.s32.totalorder %v1135, 1
        %v1140 = vsel %vm1136, %v1095, %v1124
        %v1141 = vsel %vm1137, %v1093, %v1125
        %v1142 = vsel %vm1138, %v1091, %v1126
        %v1143 = vsel %vm1139, %v1097, %v1127
        %v1144 = vsel %vm1136, %v1096, %v1128
        %v1145 = vsel %vm1137, %v1094, %v1129
        %v1146 = vsel %vm1138, %v1092, %v1130
        %v1147 = vsel %vm1139, %v1098, %v1131
        %vm1148 = vcmask 261120
        %1149 = vst.msk [vmem:[%s178] sm:$0xff] %vm1148, %v1140
        %1150 = vst.msk [vmem:[%s178 + $0x8] sm:$0xff] %vm1148, %v1141
        %1151 = vst.msk [vmem:[%s178 + $0x10] sm:$0xff] %vm1148, %v1142
        %1152 = vst.msk [vmem:[%s178 + $0x18] sm:$0xff] %vm1148, %v1143
        %1153 = vst.msk [vmem:[%s178 + $0x20] sm:$0xff] %vm1148, %v1144
        %1154 = vst.msk [vmem:[%s178 + $0x28] sm:$0xff] %vm1148, %v1145
        %1155 = vst.msk [vmem:[%s178 + $0x30] sm:$0xff] %vm1148, %v1146
        %1156 = vst.msk [vmem:[%s178 + $0x38] sm:$0xff] %vm1148, %v1147
        %s1157 = sand.u32 %s90, 1
        %s1158 = scalar_lea.sflag [#allocation4], %s1157
        %s1159 = sand.u32 %s90, 1
        %s1160 = smul.addr %s1159, 64
        %s1161 = scalar_lea.vmem [#allocation5], %s1160
        // Predicated region
        $region29: #{iwt.1} parent=23 // pred_check
          %p1162 = pneg %p100
        $region30: #{iwt.1} parent=23 // pred_check_branch
          %1164 = sbr.rel (%p1162) target = $region32
        $region31: #{iwt.1} parent=23 // pred_region
          %s1165 = smul.u32 2, %s25
          %s1166 = smul.u32 4, %s26
          %s1168 = ssub.s32 1024, 1024
          %1169 = vsyncadd %s1158, %s1168
          %s1170 = sadd.s32 %s27, %s1166
          %s1171 = smul.addr %s1165, 4
          %s1172 = sadd.s32 %s1170, %s1171
          %s1173 = smul.addr %s24, 8
          %s1174 = sadd.s32 %s1172, %s1173
          %s1175 = smul.addr %s1174, 128
          %s1176 = scalar_lea.hbm %s1, %s1175
          %s1177 = sshll.u32 %s1161, 4
          %s1178 = int_to_ptr.vmem [resolvable:$true] %s1177
          %1183 = dma.vmem_to_hbm [thread:$0]  %s1178, 1024, %s1176, %s1158, 128, 128, 8
        $region32: #{iwt.1} parent=23 // pred_fallthru
          _
      $region24: #{iwt.1} parent=5 // pred_fallthru
        _
      %p1184 = scmp.le.s32.totalorder 2, %s13
      // Predicated region
      $region33: #{iwt.1} parent=5 // pred_check
        %p1185 = pneg %p1184
      $region34: #{iwt.1} parent=5 // pred_check_branch
        %1187 = sbr.rel (%p1185) target = $region36
      $region35: #{iwt.1} parent=5 // pred_region
        %s1188 = ssub.s32 %s13, 2
        // Predicated region
        $region37: #{iwt.1} parent=35 // pred_check
          %p1189 = pneg %p106
        $region38: #{iwt.1} parent=35 // pred_check_branch
          %1191 = sbr.rel (%p1189) target = $region40
        $region39: #{iwt.1} parent=35 // pred_region
          %s1192 = sand.u32 %s91, 1
          %s1193 = scalar_lea.sflag [#allocation4], %s1192
          %s1194 = sand.u32 %s91, 1
          %s1195 = smul.addr %s1194, 64
          %s1196 = scalar_lea.vmem [#allocation5], %s1195
          %1197 = dma.done %s1193, 1024
        $region40: #{iwt.1} parent=35 // pred_fallthru
          _
      $region36: #{iwt.1} parent=5 // pred_fallthru
        _
    $region6: #{iwt.1} parent=1 // loop_footer
      %s17 = sadd.s32 1, %s13
    $region7: #{iwt.1} parent=1 // loop_footer_branch
      %12 = sbr.rel target = $region3
    $region8: #{iwt.1} parent=1 // loop_exit
      _
    %1198 = vsyncpa [#allocation3], 1
    %s1199 = scalar_lea.sflag [#allocation3], 1
    %1200 = vsyncpa %s1199, 1
    %1201 = vsyncpa [#allocation4], 1
    %s1202 = scalar_lea.sflag [#allocation4], 1
    %1203 = vsyncpa %s1202, 1

</llo_original>
